<compile_context>
chip_gen: v7x
topology: tpu7x:2x2x1
jax: 0.10.0
libtpu: 0.0.40
codegen_flags: <defaults>
</compile_context>

<pallas_src>
import functools

import jax
import jax.numpy as jnp
from jax.experimental import pallas as pl
from jax.experimental.pallas import tpu as pltpu


# ----------------------------------------------------------------------------
# Pallas kernel: full encoder layer for one batch element.
# ----------------------------------------------------------------------------
def _encoder_layer_kernel(
    x_ref,       # (S, D)        f32   tokens for this batch element
    wqkv_ref,    # (H, D, 3h)    bf16  per-head [q|k|v] projection (q/k RoPE-permuted, q scaled)
    bqkv_ref,    # (H, 1, 3h)    f32
    cos_ref,     # (S, h)        f32   RoPE cos, permuted channel layout
    sin_ref,     # (S, h)        f32   RoPE sin, permuted layout, sign folded in
    woutT_ref,   # (H, h, D)     bf16  out-proj rows grouped per head
    bout_ref,    # (1, D)        f32
    g1_ref,      # (1, D)        f32
    be1_ref,     # (1, D)        f32
    w1T_ref,     # (D, F)        bf16
    b1_ref,      # (1, F)        f32
    w2T_ref,     # (F, D)        bf16
    b2_ref,      # (1, D)        f32
    g2_ref,      # (1, D)        f32
    be2_ref,     # (1, D)        f32
    o_ref,       # (S, D)        f32
    acc_ref,     # (S, D)        f32   VMEM scratch: attention-output accumulator
    *,
    num_heads: int,
    head_dim: int,
    eps: float = 1e-5,
):
    half = head_dim // 2

    x = x_ref[...]                        # f32, kept for residual / LayerNorm stats
    x_bf = x.astype(jnp.bfloat16)         # bf16 operand for the MXU
    cos = cos_ref[...]
    sin = sin_ref[...]

    acc_ref[...] = jnp.zeros_like(acc_ref)

    def head_body(h, carry):
        # Per-head QKV projection: (S, D) @ (D, 3h) -> (S, 3h), f32 accumulate.
        qkv = jnp.dot(x_bf, wqkv_ref[h],
                      preferred_element_type=jnp.float32) + bqkv_ref[h]
        q = qkv[:, 0:head_dim]
        k = qkv[:, head_dim:2 * head_dim]
        v = qkv[:, 2 * head_dim:3 * head_dim]

        # RoPE: q/k channels were permuted (even-first, odd-second) at build time,
        # so rotate_every_two() reduces to swapping the two halves of each head.
        # TODO(synk): use pltpu.roll(q, half, axis=-1) at production head_dim.
        q = q * cos + jnp.concatenate([q[:, half:], q[:, :half]], axis=-1) * sin
        k = k * cos + jnp.concatenate([k[:, half:], k[:, :half]], axis=-1) * sin

        # q already carries the 1/sqrt(head_dim) scale (folded into Wq / bq).
        s = jax.lax.dot_general(
            q.astype(jnp.bfloat16), k.astype(jnp.bfloat16),
            (((1,), (1,)), ((), ())),
            preferred_element_type=jnp.float32)                      # (S, S)
        s = s - jnp.max(s, axis=-1, keepdims=True)
        p = jnp.exp(s)
        p = p * pl.reciprocal(jnp.sum(p, axis=-1, keepdims=True), approx=True)

        attn_h = jnp.dot(p.astype(jnp.bfloat16), v.astype(jnp.bfloat16),
                         preferred_element_type=jnp.float32)          # (S, h)

        # Per-head output-projection accumulation (no lane concat of heads).
        acc_ref[...] += jnp.dot(attn_h.astype(jnp.bfloat16), woutT_ref[h],
                                preferred_element_type=jnp.float32)
        return carry

    jax.lax.fori_loop(0, num_heads, head_body, 0)

    attn = acc_ref[...] + bout_ref[...]

    # ---- Residual + LayerNorm 1 (f32 statistics) -----------------------------
    h1 = x + attn
    mu = jnp.mean(h1, axis=-1, keepdims=True)
    var = jnp.mean((h1 - mu) ** 2, axis=-1, keepdims=True)
    h1 = (h1 - mu) * jax.lax.rsqrt(var + eps) * g1_ref[...] + be1_ref[...]

    # ---- Feed-forward (bf16 matmuls, f32 accumulate) --------------------------
    f = jnp.dot(h1.astype(jnp.bfloat16), w1T_ref[...],
                preferred_element_type=jnp.float32) + b1_ref[...]
    f = jnp.maximum(f, 0.0)
    f = jnp.dot(f.astype(jnp.bfloat16), w2T_ref[...],
                preferred_element_type=jnp.float32) + b2_ref[...]

    # ---- Residual + LayerNorm 2 -----------------------------------------------
    h2 = h1 + f
    mu2 = jnp.mean(h2, axis=-1, keepdims=True)
    var2 = jnp.mean((h2 - mu2) ** 2, axis=-1, keepdims=True)
    o_ref[...] = ((h2 - mu2) * jax.lax.rsqrt(var2 + eps) * g2_ref[...]
                  + be2_ref[...]).astype(o_ref.dtype)


# ----------------------------------------------------------------------------
# Glue: parameter preparation + pallas_call wrapper.
# ----------------------------------------------------------------------------
def transformer_encoder_layer_rope(src, params, *, num_heads):
    B, S, D = src.shape
    hd = D // num_heads
    half = hd // 2
    Fdim = params["w1"].shape[0]
    scale = 1.0 / (hd ** 0.5)

    # Even-first / odd-second channel permutation within each head (folds the
    # rotate_every_two interleave into the projection weights).
    perm = jnp.concatenate([jnp.arange(0, hd, 2), jnp.arange(1, hd, 2)])

    wqkv, bqkv = params["wqkv"], params["bqkv"]                  # (3D, D), (3D,)
    wq = wqkv[0:D].reshape(num_heads, hd, D)
    wk = wqkv[D:2 * D].reshape(num_heads, hd, D)
    wv = wqkv[2 * D:3 * D].reshape(num_heads, hd, D)
    bq = bqkv[0:D].reshape(num_heads, hd)
    bk = bqkv[D:2 * D].reshape(num_heads, hd)
    bv = bqkv[2 * D:3 * D].reshape(num_heads, hd)

    # Per-head [q | k | v] projection, q channels scaled by 1/sqrt(hd), q/k permuted.
    w_heads = jnp.concatenate([wq[:, perm, :] * scale, wk[:, perm, :], wv], axis=1)
    w_heads = jnp.transpose(w_heads, (0, 2, 1)).astype(jnp.bfloat16)       # (H, D, 3h)
    b_heads = jnp.concatenate([bq[:, perm] * scale, bk[:, perm], bv],
                              axis=1)[:, None, :].astype(jnp.float32)       # (H, 1, 3h)

    woutT_heads = params["wout"].T.reshape(num_heads, hd, D).astype(jnp.bfloat16)

    # RoPE tables, (S, head_dim), permuted layout; rotation sign folded into sin.
    inv_freq = 1.0 / (10000.0 ** (jnp.arange(0, hd, 2, dtype=jnp.float32) / hd))
    t = jnp.arange(S, dtype=jnp.float32)
    emb = jnp.concatenate([t[:, None] * inv_freq[None, :]] * 2, axis=-1)    # (S, hd)
    cos_p = jnp.cos(emb)[:, perm].astype(jnp.float32)
    sign = jnp.concatenate([-jnp.ones((half,), jnp.float32),
                            jnp.ones((half,), jnp.float32)])
    sin_p = (jnp.sin(emb)[:, perm] * sign[None, :]).astype(jnp.float32)

    row = lambda v: v[None, :].astype(jnp.float32)
    const2d = lambda shape: pl.BlockSpec(shape, lambda b: (0, 0))
    const3d = lambda shape: pl.BlockSpec(shape, lambda b: (0, 0, 0))

    kernel = functools.partial(_encoder_layer_kernel,
                               num_heads=num_heads, head_dim=hd)

    grid_spec = pltpu.PrefetchScalarGridSpec(
        num_scalar_prefetch=0,
        grid=(B,),
        in_specs=[
            pl.BlockSpec((pl.Squeezed(), S, D), lambda b: (b, 0, 0)),   # x
            const3d((num_heads, D, 3 * hd)),                            # w_heads  (bf16)
            const3d((num_heads, 1, 3 * hd)),                            # b_heads
            const2d((S, hd)),                                           # cos (permuted)
            const2d((S, hd)),                                           # sin (permuted, signed)
            const3d((num_heads, hd, D)),                                # woutT    (bf16)
            const2d((1, D)),                                            # bout
            const2d((1, D)), const2d((1, D)),                           # gamma1, beta1
            const2d((D, Fdim)), const2d((1, Fdim)),                     # w1T (bf16), b1
            const2d((Fdim, D)), const2d((1, D)),                        # w2T (bf16), b2
            const2d((1, D)), const2d((1, D)),                           # gamma2, beta2
        ],
        out_specs=pl.BlockSpec((pl.Squeezed(), S, D), lambda b: (b, 0, 0)),
        scratch_shapes=[pltpu.VMEM((S, D), jnp.float32)],               # attn accumulator
    )

    return pl.pallas_call(
        kernel,
        out_shape=jax.ShapeDtypeStruct((B, S, D), jnp.float32),
        grid_spec=grid_spec,
        compiler_params=pltpu.CompilerParams(
            dimension_semantics=("parallel",),
            vmem_limit_bytes=64 * 1024 * 1024,
        ),
    )(
        src,                                  # native dtype, no host-side f32 copy
        w_heads, b_heads, cos_p, sin_p,
        woutT_heads, row(params["bout"]),
        row(params["gamma1"]), row(params["beta1"]),
        params["w1"].T.astype(jnp.bfloat16), row(params["b1"]),
        params["w2"].T.astype(jnp.bfloat16), row(params["b2"]),
        row(params["gamma2"]), row(params["beta2"]),
    )


# ----------------------------------------------------------------------------
# Pure-JAX reference (mirrors the PyTorch module, eval mode, f32).
# ----------------------------------------------------------------------------
def _rotate_every_two_ref(x):
    x1 = x[..., ::2]
    x2 = x[..., 1::2]
    return jnp.stack((-x2, x1), axis=-1).reshape(x.shape)


def _layernorm_ref(x, g, b, eps=1e-5):
    mu = jnp.mean(x, axis=-1, keepdims=True)
    var = jnp.mean((x - mu) ** 2, axis=-1, keepdims=True)
    return (x - mu) / jnp.sqrt(var + eps) * g + b


def reference_forward(src, params, *, num_heads):
    B, S, D = src.shape
    hd = D // num_heads
    qkv = src @ params["wqkv"].T + params["bqkv"]
    qkv = qkv.reshape(B, S, 3, num_heads, hd).transpose(2, 0, 3, 1, 4)
    q, k, v = qkv[0], qkv[1], qkv[2]
    inv_freq = 1.0 / (10000.0 ** (jnp.arange(0, hd, 2, dtype=jnp.float32) / hd))
    t = jnp.arange(S, dtype=jnp.float32)
    emb = jnp.concatenate([t[:, None] * inv_freq[None, :]] * 2, axis=-1)
    cos, sin = jnp.cos(emb)[None, None], jnp.sin(emb)[None, None]
    q = q * cos + _rotate_every_two_ref(q) * sin
    k = k * cos + _rotate_every_two_ref(k) * sin
    scores = q @ jnp.swapaxes(k, -2, -1) / (hd ** 0.5)
    probs = jax.nn.softmax(scores, axis=-1)
    attn = (probs @ v).transpose(0, 2, 1, 3).reshape(B, S, D)
    attn = attn @ params["wout"].T + params["bout"]
    h1 = _layernorm_ref(src + attn, params["gamma1"], params["beta1"])
    f = jnp.maximum(h1 @ params["w1"].T + params["b1"], 0.0) @ params["w2"].T + params["b2"]
    return _layernorm_ref(h1 + f, params["gamma2"], params["beta2"])


# ----------------------------------------------------------------------------
if __name__ == "__main__":
    B, S, D, H, FF = 2, 8, 32, 4, 64

    key = jax.random.PRNGKey(0)
    ks = jax.random.split(key, 16)
    n = lambda k, shape, s=0.05: (s * jax.random.normal(k, shape)).astype(jnp.float32)

    params = {
        "wqkv":   n(ks[0], (3 * D, D)),
        "bqkv":   n(ks[1], (3 * D,)),
        "wout":   n(ks[2], (D, D)),
        "bout":   n(ks[3], (D,)),
        "w1":     n(ks[4], (FF, D)),
        "b1":     n(ks[5], (FF,)),
        "w2":     n(ks[6], (D, FF)),
        "b2":     n(ks[7], (D,)),
        "gamma1": (1.0 + n(ks[8], (D,))).astype(jnp.float32),
        "beta1":  n(ks[9], (D,)),
        "gamma2": (1.0 + n(ks[10], (D,))).astype(jnp.float32),
        "beta2":  n(ks[11], (D,)),
    }
    src = jax.random.normal(ks[12], (B, S, D), dtype=jnp.float32)

    out = transformer_encoder_layer_rope(src, params, num_heads=H)
    jax.block_until_ready(out)

    ref = reference_forward(src, params, num_heads=H)
    assert out.shape == (B, S, D)
    max_err = float(jnp.max(jnp.abs(out - ref)))
    # bf16 MXU operands + approx reciprocal => looser tolerance than pure f32.
    assert max_err < 5e-2, max_err

    print("KERNEL_OK")
</pallas_src>

<mosaic_0001>
module attributes {stable_mosaic.version = 11 : i64} {
  func.func @_encoder_layer_kernel(%arg0: i32, %arg1: memref<1x8x32xf32, #tpu.memory_space<vmem>>, %arg2: memref<4x32x24xbf16, #tpu.memory_space<vmem>>, %arg3: memref<4x1x24xf32, #tpu.memory_space<vmem>>, %arg4: memref<8x8xf32, #tpu.memory_space<vmem>>, %arg5: memref<8x8xf32, #tpu.memory_space<vmem>>, %arg6: memref<4x8x32xbf16, #tpu.memory_space<vmem>>, %arg7: memref<1x32xf32, #tpu.memory_space<vmem>>, %arg8: memref<1x32xf32, #tpu.memory_space<vmem>>, %arg9: memref<1x32xf32, #tpu.memory_space<vmem>>, %arg10: memref<32x64xbf16, #tpu.memory_space<vmem>>, %arg11: memref<1x64xf32, #tpu.memory_space<vmem>>, %arg12: memref<64x32xbf16, #tpu.memory_space<vmem>>, %arg13: memref<1x32xf32, #tpu.memory_space<vmem>>, %arg14: memref<1x32xf32, #tpu.memory_space<vmem>>, %arg15: memref<1x32xf32, #tpu.memory_space<vmem>>, %arg16: memref<1x8x32xf32, #tpu.memory_space<vmem>>, %arg17: memref<8x32xf32, #tpu.memory_space<vmem>>) attributes {dimension_semantics = [#tpu.dimension_semantics<parallel>], iteration_bounds = array<i64: 2>, scalar_prefetch = 0 : i64, scratch_operands = 1 : i64, tpu.core_type = #tpu.core_type<tc>, window_params = [{transform_indices = @transform_0, window_bounds = array<i64: 1, 8, 32>}, {pipeline_mode = #tpu.pipeline_mode<synchronous>, transform_indices = @transform_1, window_bounds = array<i64: 4, 32, 24>}, {pipeline_mode = #tpu.pipeline_mode<synchronous>, transform_indices = @transform_2, window_bounds = array<i64: 4, 1, 24>}, {pipeline_mode = #tpu.pipeline_mode<synchronous>, transform_indices = @transform_3, window_bounds = array<i64: 8, 8>}, {pipeline_mode = #tpu.pipeline_mode<synchronous>, transform_indices = @transform_4, window_bounds = array<i64: 8, 8>}, {pipeline_mode = #tpu.pipeline_mode<synchronous>, transform_indices = @transform_5, window_bounds = array<i64: 4, 8, 32>}, {pipeline_mode = #tpu.pipeline_mode<synchronous>, transform_indices = @transform_6, window_bounds = array<i64: 1, 32>}, {pipeline_mode = #tpu.pipeline_mode<synchronous>, transform_indices = @transform_7, window_bounds = array<i64: 1, 32>}, {pipeline_mode = #tpu.pipeline_mode<synchronous>, transform_indices = @transform_8, window_bounds = array<i64: 1, 32>}, {pipeline_mode = #tpu.pipeline_mode<synchronous>, transform_indices = @transform_9, window_bounds = array<i64: 32, 64>}, {pipeline_mode = #tpu.pipeline_mode<synchronous>, transform_indices = @transform_10, window_bounds = array<i64: 1, 64>}, {pipeline_mode = #tpu.pipeline_mode<synchronous>, transform_indices = @transform_11, window_bounds = array<i64: 64, 32>}, {pipeline_mode = #tpu.pipeline_mode<synchronous>, transform_indices = @transform_12, window_bounds = array<i64: 1, 32>}, {pipeline_mode = #tpu.pipeline_mode<synchronous>, transform_indices = @transform_13, window_bounds = array<i64: 1, 32>}, {pipeline_mode = #tpu.pipeline_mode<synchronous>, transform_indices = @transform_14, window_bounds = array<i64: 1, 32>}, {transform_indices = @transform_15, window_bounds = array<i64: 1, 8, 32>}]} {
    %c0 = arith.constant 0 : index
    %c0_0 = arith.constant 0 : index
    %c0_1 = arith.constant 0 : index
    %0 = vector.load %arg1[%c0, %c0_0, %c0_1] : memref<1x8x32xf32, #tpu.memory_space<vmem>>, vector<1x8x32xf32>
    %1 = vector.shape_cast %0 : vector<1x8x32xf32> to vector<8x32xf32>
    %2 = arith.truncf %1 : vector<8x32xf32> to vector<8x32xbf16>
    %c0_2 = arith.constant 0 : index
    %c0_3 = arith.constant 0 : index
    %3 = vector.load %arg4[%c0_2, %c0_3] : memref<8x8xf32, #tpu.memory_space<vmem>>, vector<8x8xf32>
    %c0_4 = arith.constant 0 : index
    %c0_5 = arith.constant 0 : index
    %4 = vector.load %arg5[%c0_4, %c0_5] : memref<8x8xf32, #tpu.memory_space<vmem>>, vector<8x8xf32>
    %cst = arith.constant 0.000000e+00 : f32
    %5 = vector.broadcast %cst : f32 to vector<8x32xf32>
    %c0_6 = arith.constant 0 : index
    %c0_7 = arith.constant 0 : index
    %6 = vector.load %arg17[%c0_6, %c0_7] : memref<8x32xf32, #tpu.memory_space<vmem>>, vector<8x32xf32>
    tpu.vector_store %arg17[%c0_6, %c0_7], %5 {strides = array<i32>} : memref<8x32xf32, #tpu.memory_space<vmem>>, vector<8x32xf32>,
    %c0_i32 = arith.constant 0 : i32
    %c4_i32 = arith.constant 4 : i32
    %7 = arith.addi %c0_i32, %c4_i32 : i32
    %c1_i32 = arith.constant 1 : i32
    scf.for %arg18 = %c0_i32 to %7 step %c1_i32  : i32 {
      %79 = arith.index_cast %arg18 : i32 to index
      %c0_45 = arith.constant 0 : index
      %c0_46 = arith.constant 0 : index
      %80 = vector.load %arg2[%79, %c0_45, %c0_46] : memref<4x32x24xbf16, #tpu.memory_space<vmem>>, vector<1x32x24xbf16>
      %81 = vector.shape_cast %80 : vector<1x32x24xbf16> to vector<32x24xbf16>
      %cst_47 = arith.constant dense<0.000000e+00> : vector<8x24xf32>
      %82 = tpu.matmul %2, %81, %cst_47 {dimension_numbers = #tpu.dot_dimension_numbers<[1], [0], [0], [1], [0, 0, 1, 1], [], []>} : vector<8x32xbf16>, vector<32x24xbf16>, vector<8x24xf32> -> vector<8x24xf32>
      %83 = arith.index_cast %arg18 : i32 to index
      %c0_48 = arith.constant 0 : index
      %c0_49 = arith.constant 0 : index
      %84 = vector.load %arg3[%83, %c0_48, %c0_49] : memref<4x1x24xf32, #tpu.memory_space<vmem>>, vector<1x1x24xf32>
      %85 = vector.shape_cast %84 : vector<1x1x24xf32> to vector<1x24xf32>
      %86 = vector.broadcast %85 : vector<1x24xf32> to vector<8x24xf32>
      %87 = arith.addf %82, %86 : vector<8x24xf32>
      %88 = vector.extract_strided_slice %87 {offsets = [0, 0], sizes = [8, 8], strides = [1, 1]} : vector<8x24xf32> to vector<8x8xf32>
      %89 = vector.extract_strided_slice %87 {offsets = [0, 8], sizes = [8, 8], strides = [1, 1]} : vector<8x24xf32> to vector<8x8xf32>
      %90 = vector.extract_strided_slice %87 {offsets = [0, 16], sizes = [8, 8], strides = [1, 1]} : vector<8x24xf32> to vector<8x8xf32>
      %91 = arith.mulf %88, %3 : vector<8x8xf32>
      %92 = vector.extract_strided_slice %88 {offsets = [0, 4], sizes = [8, 4], strides = [1, 1]} : vector<8x8xf32> to vector<8x4xf32>
      %93 = vector.extract_strided_slice %88 {offsets = [0, 0], sizes = [8, 4], strides = [1, 1]} : vector<8x8xf32> to vector<8x4xf32>
      %94 = tpu.concatenate %92, %93 in 1 : vector<8x4xf32>, vector<8x4xf32> -> vector<8x8xf32>
      %95 = arith.mulf %94, %4 : vector<8x8xf32>
      %96 = arith.addf %91, %95 : vector<8x8xf32>
      %97 = arith.mulf %89, %3 : vector<8x8xf32>
      %98 = vector.extract_strided_slice %89 {offsets = [0, 4], sizes = [8, 4], strides = [1, 1]} : vector<8x8xf32> to vector<8x4xf32>
      %99 = vector.extract_strided_slice %89 {offsets = [0, 0], sizes = [8, 4], strides = [1, 1]} : vector<8x8xf32> to vector<8x4xf32>
      %100 = tpu.concatenate %98, %99 in 1 : vector<8x4xf32>, vector<8x4xf32> -> vector<8x8xf32>
      %101 = arith.mulf %100, %4 : vector<8x8xf32>
      %102 = arith.addf %97, %101 : vector<8x8xf32>
      %103 = arith.truncf %96 : vector<8x8xf32> to vector<8x8xbf16>
      %104 = arith.truncf %102 : vector<8x8xf32> to vector<8x8xbf16>
      %cst_50 = arith.constant dense<0.000000e+00> : vector<8x8xf32>
      %105 = tpu.matmul %103, %104, %cst_50 {dimension_numbers = #tpu.dot_dimension_numbers<[1], [1], [0], [0], [0, 0, 1, 0], [], []>} : vector<8x8xbf16>, vector<8x8xbf16>, vector<8x8xf32> -> vector<8x8xf32>
      %cst_51 = arith.constant dense<0xFF800000> : vector<8xf32>
      %106 = vector.multi_reduction <maximumf>, %105, %cst_51 [1] : vector<8x8xf32> to vector<8xf32>
      %107 = vector.shape_cast %106 : vector<8xf32> to vector<8x1xf32>
      %108 = vector.broadcast %107 : vector<8x1xf32> to vector<8x8xf32>
      %109 = arith.subf %105, %108 : vector<8x8xf32>
      %110 = math.exp %109 : vector<8x8xf32>
      %cst_52 = arith.constant dense<0.000000e+00> : vector<8xf32>
      %111 = vector.multi_reduction <add>, %110, %cst_52 [1] : vector<8x8xf32> to vector<8xf32>
      %112 = vector.shape_cast %111 : vector<8xf32> to vector<8x1xf32>
      %113 = tpu.reciprocal %112 {approx = true} : vector<8x1xf32> -> vector<8x1xf32>
      %114 = vector.broadcast %113 : vector<8x1xf32> to vector<8x8xf32>
      %115 = arith.mulf %110, %114 : vector<8x8xf32>
      %116 = arith.truncf %115 : vector<8x8xf32> to vector<8x8xbf16>
      %117 = arith.truncf %90 : vector<8x8xf32> to vector<8x8xbf16>
      %cst_53 = arith.constant dense<0.000000e+00> : vector<8x8xf32>
      %118 = tpu.matmul %116, %117, %cst_53 {dimension_numbers = #tpu.dot_dimension_numbers<[1], [0], [0], [1], [0, 0, 1, 1], [], []>} : vector<8x8xbf16>, vector<8x8xbf16>, vector<8x8xf32> -> vector<8x8xf32>
      %c0_54 = arith.constant 0 : index
      %c0_55 = arith.constant 0 : index
      %119 = vector.load %arg17[%c0_54, %c0_55] : memref<8x32xf32, #tpu.memory_space<vmem>>, vector<8x32xf32>
      %120 = arith.truncf %118 : vector<8x8xf32> to vector<8x8xbf16>
      %121 = arith.index_cast %arg18 : i32 to index
      %c0_56 = arith.constant 0 : index
      %c0_57 = arith.constant 0 : index
      %122 = vector.load %arg6[%121, %c0_56, %c0_57] : memref<4x8x32xbf16, #tpu.memory_space<vmem>>, vector<1x8x32xbf16>
      %123 = vector.shape_cast %122 : vector<1x8x32xbf16> to vector<8x32xbf16>
      %cst_58 = arith.constant dense<0.000000e+00> : vector<8x32xf32>
      %124 = tpu.matmul %120, %123, %cst_58 {dimension_numbers = #tpu.dot_dimension_numbers<[1], [0], [0], [1], [0, 0, 1, 1], [], []>} : vector<8x8xbf16>, vector<8x32xbf16>, vector<8x32xf32> -> vector<8x32xf32>
      %125 = arith.addf %119, %124 : vector<8x32xf32>
      %c0_59 = arith.constant 0 : index
      %c0_60 = arith.constant 0 : index
      %126 = vector.load %arg17[%c0_59, %c0_60] : memref<8x32xf32, #tpu.memory_space<vmem>>, vector<8x32xf32>
      tpu.vector_store %arg17[%c0_59, %c0_60], %125 {strides = array<i32>} : memref<8x32xf32, #tpu.memory_space<vmem>>, vector<8x32xf32>,
    }
    %c4_i32_8 = arith.constant 4 : i32
    %c0_9 = arith.constant 0 : index
    %c0_10 = arith.constant 0 : index
    %8 = vector.load %arg17[%c0_9, %c0_10] : memref<8x32xf32, #tpu.memory_space<vmem>>, vector<8x32xf32>
    %c0_11 = arith.constant 0 : index
    %c0_12 = arith.constant 0 : index
    %9 = vector.load %arg7[%c0_11, %c0_12] : memref<1x32xf32, #tpu.memory_space<vmem>>, vector<1x32xf32>
    %10 = vector.broadcast %9 : vector<1x32xf32> to vector<8x32xf32>
    %11 = arith.addf %8, %10 : vector<8x32xf32>
    %12 = arith.addf %1, %11 : vector<8x32xf32>
    %cst_13 = arith.constant dense<0.000000e+00> : vector<8xf32>
    %13 = vector.multi_reduction <add>, %12, %cst_13 [1] : vector<8x32xf32> to vector<8xf32>
    %14 = vector.shape_cast %13 : vector<8xf32> to vector<8x1xf32>
    %cst_14 = arith.constant 3.200000e+01 : f32
    %15 = vector.broadcast %cst_14 : f32 to vector<8x1xf32>
    %16 = arith.divf %14, %15 : vector<8x1xf32>
    %17 = vector.broadcast %16 : vector<8x1xf32> to vector<8x32xf32>
    %18 = arith.subf %12, %17 : vector<8x32xf32>
    %19 = arith.mulf %18, %18 : vector<8x32xf32>
    %cst_15 = arith.constant dense<0.000000e+00> : vector<8xf32>
    %20 = vector.multi_reduction <add>, %19, %cst_15 [1] : vector<8x32xf32> to vector<8xf32>
    %21 = vector.shape_cast %20 : vector<8xf32> to vector<8x1xf32>
    %cst_16 = arith.constant 3.200000e+01 : f32
    %22 = vector.broadcast %cst_16 : f32 to vector<8x1xf32>
    %23 = arith.divf %21, %22 : vector<8x1xf32>
    %24 = vector.broadcast %16 : vector<8x1xf32> to vector<8x32xf32>
    %25 = arith.subf %12, %24 : vector<8x32xf32>
    %cst_17 = arith.constant 9.99999974E-6 : f32
    %26 = vector.broadcast %cst_17 : f32 to vector<8x1xf32>
    %27 = arith.addf %23, %26 : vector<8x1xf32>
    %28 = math.rsqrt %27 : vector<8x1xf32>
    %29 = vector.broadcast %28 : vector<8x1xf32> to vector<8x32xf32>
    %30 = arith.mulf %25, %29 : vector<8x32xf32>
    %c0_18 = arith.constant 0 : index
    %c0_19 = arith.constant 0 : index
    %31 = vector.load %arg8[%c0_18, %c0_19] : memref<1x32xf32, #tpu.memory_space<vmem>>, vector<1x32xf32>
    %32 = vector.broadcast %31 : vector<1x32xf32> to vector<8x32xf32>
    %33 = arith.mulf %30, %32 : vector<8x32xf32>
    %c0_20 = arith.constant 0 : index
    %c0_21 = arith.constant 0 : index
    %34 = vector.load %arg9[%c0_20, %c0_21] : memref<1x32xf32, #tpu.memory_space<vmem>>, vector<1x32xf32>
    %35 = vector.broadcast %34 : vector<1x32xf32> to vector<8x32xf32>
    %36 = arith.addf %33, %35 : vector<8x32xf32>
    %37 = arith.truncf %36 : vector<8x32xf32> to vector<8x32xbf16>
    %c0_22 = arith.constant 0 : index
    %c0_23 = arith.constant 0 : index
    %38 = vector.load %arg10[%c0_22, %c0_23] : memref<32x64xbf16, #tpu.memory_space<vmem>>, vector<32x64xbf16>
    %cst_24 = arith.constant dense<0.000000e+00> : vector<8x64xf32>
    %39 = tpu.matmul %37, %38, %cst_24 {dimension_numbers = #tpu.dot_dimension_numbers<[1], [0], [0], [1], [0, 0, 1, 1], [], []>} : vector<8x32xbf16>, vector<32x64xbf16>, vector<8x64xf32> -> vector<8x64xf32>
    %c0_25 = arith.constant 0 : index
    %c0_26 = arith.constant 0 : index
    %40 = vector.load %arg11[%c0_25, %c0_26] : memref<1x64xf32, #tpu.memory_space<vmem>>, vector<1x64xf32>
    %41 = vector.broadcast %40 : vector<1x64xf32> to vector<8x64xf32>
    %42 = arith.addf %39, %41 : vector<8x64xf32>
    %cst_27 = arith.constant 0.000000e+00 : f32
    %43 = vector.broadcast %cst_27 : f32 to vector<8x64xf32>
    %44 = arith.maximumf %42, %43 : vector<8x64xf32>
    %45 = arith.truncf %44 : vector<8x64xf32> to vector<8x64xbf16>
    %c0_28 = arith.constant 0 : index
    %c0_29 = arith.constant 0 : index
    %46 = vector.load %arg12[%c0_28, %c0_29] : memref<64x32xbf16, #tpu.memory_space<vmem>>, vector<64x32xbf16>
    %cst_30 = arith.constant dense<0.000000e+00> : vector<8x32xf32>
    %47 = tpu.matmul %45, %46, %cst_30 {dimension_numbers = #tpu.dot_dimension_numbers<[1], [0], [0], [1], [0, 0, 1, 1], [], []>} : vector<8x64xbf16>, vector<64x32xbf16>, vector<8x32xf32> -> vector<8x32xf32>
    %c0_31 = arith.constant 0 : index
    %c0_32 = arith.constant 0 : index
    %48 = vector.load %arg13[%c0_31, %c0_32] : memref<1x32xf32, #tpu.memory_space<vmem>>, vector<1x32xf32>
    %49 = vector.broadcast %48 : vector<1x32xf32> to vector<8x32xf32>
    %50 = arith.addf %47, %49 : vector<8x32xf32>
    %51 = arith.addf %36, %50 : vector<8x32xf32>
    %cst_33 = arith.constant dense<0.000000e+00> : vector<8xf32>
    %52 = vector.multi_reduction <add>, %51, %cst_33 [1] : vector<8x32xf32> to vector<8xf32>
    %53 = vector.shape_cast %52 : vector<8xf32> to vector<8x1xf32>
    %cst_34 = arith.constant 3.200000e+01 : f32
    %54 = vector.broadcast %cst_34 : f32 to vector<8x1xf32>
    %55 = arith.divf %53, %54 : vector<8x1xf32>
    %56 = vector.broadcast %55 : vector<8x1xf32> to vector<8x32xf32>
    %57 = arith.subf %51, %56 : vector<8x32xf32>
    %58 = arith.mulf %57, %57 : vector<8x32xf32>
    %cst_35 = arith.constant dense<0.000000e+00> : vector<8xf32>
    %59 = vector.multi_reduction <add>, %58, %cst_35 [1] : vector<8x32xf32> to vector<8xf32>
    %60 = vector.shape_cast %59 : vector<8xf32> to vector<8x1xf32>
    %cst_36 = arith.constant 3.200000e+01 : f32
    %61 = vector.broadcast %cst_36 : f32 to vector<8x1xf32>
    %62 = arith.divf %60, %61 : vector<8x1xf32>
    %63 = vector.broadcast %55 : vector<8x1xf32> to vector<8x32xf32>
    %64 = arith.subf %51, %63 : vector<8x32xf32>
    %cst_37 = arith.constant 9.99999974E-6 : f32
    %65 = vector.broadcast %cst_37 : f32 to vector<8x1xf32>
    %66 = arith.addf %62, %65 : vector<8x1xf32>
    %67 = math.rsqrt %66 : vector<8x1xf32>
    %68 = vector.broadcast %67 : vector<8x1xf32> to vector<8x32xf32>
    %69 = arith.mulf %64, %68 : vector<8x32xf32>
    %c0_38 = arith.constant 0 : index
    %c0_39 = arith.constant 0 : index
    %70 = vector.load %arg14[%c0_38, %c0_39] : memref<1x32xf32, #tpu.memory_space<vmem>>, vector<1x32xf32>
    %71 = vector.broadcast %70 : vector<1x32xf32> to vector<8x32xf32>
    %72 = arith.mulf %69, %71 : vector<8x32xf32>
    %c0_40 = arith.constant 0 : index
    %c0_41 = arith.constant 0 : index
    %73 = vector.load %arg15[%c0_40, %c0_41] : memref<1x32xf32, #tpu.memory_space<vmem>>, vector<1x32xf32>
    %74 = vector.broadcast %73 : vector<1x32xf32> to vector<8x32xf32>
    %75 = arith.addf %72, %74 : vector<8x32xf32>
    %c0_42 = arith.constant 0 : index
    %c0_43 = arith.constant 0 : index
    %c0_44 = arith.constant 0 : index
    %76 = vector.load %arg16[%c0_42, %c0_43, %c0_44] : memref<1x8x32xf32, #tpu.memory_space<vmem>>, vector<1x8x32xf32>
    %77 = vector.shape_cast %76 : vector<1x8x32xf32> to vector<8x32xf32>
    %78 = vector.shape_cast %75 : vector<8x32xf32> to vector<1x8x32xf32>
    tpu.vector_store %arg16[%c0_42, %c0_43, %c0_44], %78 {strides = array<i32>} : memref<1x8x32xf32, #tpu.memory_space<vmem>>, vector<1x8x32xf32>,
    return
  }
  func.func @transform_0(%arg0: i32) -> (i32, i32, i32) {
    %c0_i32 = arith.constant 0 : i32
    %c0_i32_0 = arith.constant 0 : i32
    %c0_i32_1 = arith.constant 0 : i32
    return %arg0, %c0_i32, %c0_i32_0 : i32, i32, i32
  }
  func.func @transform_1(%arg0: i32) -> (i32, i32, i32) {
    %c0_i32 = arith.constant 0 : i32
    %c0_i32_0 = arith.constant 0 : i32
    %c0_i32_1 = arith.constant 0 : i32
    %c0_i32_2 = arith.constant 0 : i32
    return %c0_i32, %c0_i32_0, %c0_i32_1 : i32, i32, i32
  }
  func.func @transform_2(%arg0: i32) -> (i32, i32, i32) {
    %c0_i32 = arith.constant 0 : i32
    %c0_i32_0 = arith.constant 0 : i32
    %c0_i32_1 = arith.constant 0 : i32
    %c0_i32_2 = arith.constant 0 : i32
    return %c0_i32, %c0_i32_0, %c0_i32_1 : i32, i32, i32
  }
  func.func @transform_3(%arg0: i32) -> (i32, i32) {
    %c0_i32 = arith.constant 0 : i32
    %c0_i32_0 = arith.constant 0 : i32
    %c0_i32_1 = arith.constant 0 : i32
    return %c0_i32, %c0_i32_0 : i32, i32
  }
  func.func @transform_4(%arg0: i32) -> (i32, i32) {
    %c0_i32 = arith.constant 0 : i32
    %c0_i32_0 = arith.constant 0 : i32
    %c0_i32_1 = arith.constant 0 : i32
    return %c0_i32, %c0_i32_0 : i32, i32
  }
  func.func @transform_5(%arg0: i32) -> (i32, i32, i32) {
    %c0_i32 = arith.constant 0 : i32
    %c0_i32_0 = arith.constant 0 : i32
    %c0_i32_1 = arith.constant 0 : i32
    %c0_i32_2 = arith.constant 0 : i32
    return %c0_i32, %c0_i32_0, %c0_i32_1 : i32, i32, i32
  }
  func.func @transform_6(%arg0: i32) -> (i32, i32) {
    %c0_i32 = arith.constant 0 : i32
    %c0_i32_0 = arith.constant 0 : i32
    %c0_i32_1 = arith.constant 0 : i32
    return %c0_i32, %c0_i32_0 : i32, i32
  }
  func.func @transform_7(%arg0: i32) -> (i32, i32) {
    %c0_i32 = arith.constant 0 : i32
    %c0_i32_0 = arith.constant 0 : i32
    %c0_i32_1 = arith.constant 0 : i32
    return %c0_i32, %c0_i32_0 : i32, i32
  }
  func.func @transform_8(%arg0: i32) -> (i32, i32) {
    %c0_i32 = arith.constant 0 : i32
    %c0_i32_0 = arith.constant 0 : i32
    %c0_i32_1 = arith.constant 0 : i32
    return %c0_i32, %c0_i32_0 : i32, i32
  }
  func.func @transform_9(%arg0: i32) -> (i32, i32) {
    %c0_i32 = arith.constant 0 : i32
    %c0_i32_0 = arith.constant 0 : i32
    %c0_i32_1 = arith.constant 0 : i32
    return %c0_i32, %c0_i32_0 : i32, i32
  }
  func.func @transform_10(%arg0: i32) -> (i32, i32) {
    %c0_i32 = arith.constant 0 : i32
    %c0_i32_0 = arith.constant 0 : i32
    %c0_i32_1 = arith.constant 0 : i32
    return %c0_i32, %c0_i32_0 : i32, i32
  }
  func.func @transform_11(%arg0: i32) -> (i32, i32) {
    %c0_i32 = arith.constant 0 : i32
    %c0_i32_0 = arith.constant 0 : i32
    %c0_i32_1 = arith.constant 0 : i32
    return %c0_i32, %c0_i32_0 : i32, i32
  }
  func.func @transform_12(%arg0: i32) -> (i32, i32) {
    %c0_i32 = arith.constant 0 : i32
    %c0_i32_0 = arith.constant 0 : i32
    %c0_i32_1 = arith.constant 0 : i32
    return %c0_i32, %c0_i32_0 : i32, i32
  }
  func.func @transform_13(%arg0: i32) -> (i32, i32) {
    %c0_i32 = arith.constant 0 : i32
    %c0_i32_0 = arith.constant 0 : i32
    %c0_i32_1 = arith.constant 0 : i32
    return %c0_i32, %c0_i32_0 : i32, i32
  }
  func.func @transform_14(%arg0: i32) -> (i32, i32) {
    %c0_i32 = arith.constant 0 : i32
    %c0_i32_0 = arith.constant 0 : i32
    %c0_i32_1 = arith.constant 0 : i32
    return %c0_i32, %c0_i32_0 : i32, i32
  }
  func.func @transform_15(%arg0: i32) -> (i32, i32, i32) {
    %c0_i32 = arith.constant 0 : i32
    %c0_i32_0 = arith.constant 0 : i32
    %c0_i32_1 = arith.constant 0 : i32
    return %arg0, %c0_i32, %c0_i32_0 : i32, i32, i32
  }
}

</mosaic_0001>

<llo_original>
// kernel: tpu_custom_call.1
$region0: #{tpu_custom_call.1}
  #allocation0 [shape = 'u32[]', space=smem, size = 0x4, offset = 0x4, fixed_abs, tag = 'smem constant byte address 0x4 - core index']
  #allocation1 [shape = 'u32[144,128]{1,0:T(1,128)}', space=vmem, size = 0x12000, scoped, tag = 'internal scratch']
  #allocation2 [shape = 'f32[8,32]{1,0:T(8,128)}', space=vmem, size = 0x1000, scoped, tag = 'scratch operand']
  %s0 = inlined_call_operand.hbm [shape: f32[2,8,32], index: 0, kind: input, shape index: {}]
  %s1 = inlined_call_operand.hbm [shape: bf16[4,32,24], index: 1, kind: input, shape index: {}]
  %s2 = inlined_call_operand.hbm [shape: f32[4,1,24], index: 2, kind: input, shape index: {}]
  %s3 = inlined_call_operand.hbm [shape: f32[8,8], index: 3, kind: input, shape index: {}]
  %s4 = inlined_call_operand.hbm [shape: f32[8,8], index: 4, kind: input, shape index: {}]
  %s5 = inlined_call_operand.hbm [shape: bf16[4,8,32], index: 5, kind: input, shape index: {}]
  %s6 = inlined_call_operand.hbm [shape: f32[1,32], index: 6, kind: input, shape index: {}]
  %s7 = inlined_call_operand.hbm [shape: f32[1,32], index: 7, kind: input, shape index: {}]
  %s8 = inlined_call_operand.hbm [shape: f32[1,32], index: 8, kind: input, shape index: {}]
  %s9 = inlined_call_operand.hbm [shape: bf16[32,64], index: 9, kind: input, shape index: {}]
  %s10 = inlined_call_operand.hbm [shape: f32[1,64], index: 10, kind: input, shape index: {}]
  %s11 = inlined_call_operand.hbm [shape: bf16[64,32], index: 11, kind: input, shape index: {}]
  %s12 = inlined_call_operand.hbm [shape: f32[1,32], index: 12, kind: input, shape index: {}]
  %s13 = inlined_call_operand.hbm [shape: f32[1,32], index: 13, kind: input, shape index: {}]
  %s14 = inlined_call_operand.hbm [shape: f32[1,32], index: 14, kind: input, shape index: {}]
  %s15 = inlined_call_operand.hbm [shape: f32[2,8,32], index: 15, kind: output, shape index: {}]
  %s16 = sld [smem:[#allocation0]]
  $region160: #{tpu_custom_call.1} parent=0
    _
  %s18 = ssub.s32 1, %s16
  %s19 = scalar_select 0, %s18, %s16
  $region1: #{tpu_custom_call.1} parent=0
    #allocation3 [shape = 'u8[8192]{0}', space=vmem, size = 0x2000, scoped, tag = 'input window, operand 0']
    #allocation4 [shape = 's32[2]{0}', space=sflag, size = 0x8, scoped, tag = 'scoped memory for tpu_custom_call.1']
    #allocation5 [shape = 's32[2]{0}', space=sflag, size = 0x8, scoped, tag = 'scoped memory for tpu_custom_call.1']
    #allocation6 [shape = 'u8[32768]{0}', space=vmem, size = 0x8000, scoped, tag = 'input window, operand 1, single buffered']
    #allocation7 [shape = 's32[1]{0}', space=sflag, size = 0x4, scoped, tag = 'scoped memory for tpu_custom_call.1']
    #allocation8 [shape = 'u8[2048]{0}', space=vmem, size = 0x800, scoped, tag = 'input window, operand 2, single buffered']
    #allocation9 [shape = 'u8[4096]{0}', space=vmem, size = 0x1000, scoped, tag = 'input window, operand 3, single buffered']
    #allocation10 [shape = 's32[1]{0}', space=sflag, size = 0x4, scoped, tag = 'scoped memory for tpu_custom_call.1']
    #allocation11 [shape = 'u8[4096]{0}', space=vmem, size = 0x1000, scoped, tag = 'input window, operand 4, single buffered']
    #allocation12 [shape = 'u8[8192]{0}', space=vmem, size = 0x2000, scoped, tag = 'input window, operand 5, single buffered']
    #allocation13 [shape = 's32[1]{0}', space=sflag, size = 0x4, scoped, tag = 'scoped memory for tpu_custom_call.1']
    #allocation14 [shape = 'u8[512]{0}', space=vmem, size = 0x400, scoped, tag = 'input window, operand 6, single buffered']
    #allocation15 [shape = 'u8[512]{0}', space=vmem, size = 0x400, scoped, tag = 'input window, operand 7, single buffered']
    #allocation16 [shape = 's32[1]{0}', space=sflag, size = 0x4, scoped, tag = 'scoped memory for tpu_custom_call.1']
    #allocation17 [shape = 'u8[512]{0}', space=vmem, size = 0x400, scoped, tag = 'input window, operand 8, single buffered']
    #allocation18 [shape = 'u8[8192]{0}', space=vmem, size = 0x2000, scoped, tag = 'input window, operand 9, single buffered']
    #allocation19 [shape = 's32[1]{0}', space=sflag, size = 0x4, scoped, tag = 'scoped memory for tpu_custom_call.1']
    #allocation20 [shape = 'u8[512]{0}', space=vmem, size = 0x400, scoped, tag = 'input window, operand 10, single buffered']
    #allocation21 [shape = 'u8[16384]{0}', space=vmem, size = 0x4000, scoped, tag = 'input window, operand 11, single buffered']
    #allocation22 [shape = 's32[1]{0}', space=sflag, size = 0x4, scoped, tag = 'scoped memory for tpu_custom_call.1']
    #allocation23 [shape = 'u8[512]{0}', space=vmem, size = 0x400, scoped, tag = 'input window, operand 12, single buffered']
    #allocation24 [shape = 'u8[512]{0}', space=vmem, size = 0x400, scoped, tag = 'input window, operand 13, single buffered']
    #allocation25 [shape = 's32[1]{0}', space=sflag, size = 0x4, scoped, tag = 'scoped memory for tpu_custom_call.1']
    #allocation26 [shape = 'u8[512]{0}', space=vmem, size = 0x400, scoped, tag = 'input window, operand 14, single buffered']
    #allocation27 [shape = 'u8[8192]{0}', space=vmem, size = 0x2000, scoped, tag = 'output window, operand 0']
    %20 = vsyncpa [#allocation4], 0
    %s21 = scalar_lea.sflag [#allocation4], 1
    %22 = vsyncpa %s21, 0
    %23 = vsyncpa [#allocation7], 0
    %24 = vsyncpa [#allocation10], 0
    %25 = vsyncpa [#allocation13], 0
    %26 = vsyncpa [#allocation16], 0
    %27 = vsyncpa [#allocation19], 0
    %28 = vsyncpa [#allocation22], 0
    %29 = vsyncpa [#allocation25], 0
    %30 = vsyncpa [#allocation5], 0
    %s31 = scalar_lea.sflag [#allocation5], 1
    %32 = vsyncpa %s31, 0
    loop: start=0, step=1, limit=4
    $region2: #{tpu_custom_call.1} parent=1 // loop_pre_header
      _
    $region3: #{tpu_custom_call.1} parent=1 // loop_header
      %s34 = sphi 0, %s38
      %p35 = scmp.ge.s32.totalorder %s34, 4
      %s44 = sphi 0, %s46
      %s47 = sphi 0, %s44
      %s48 = sphi 0, %s47
      %s64 = sphi 0, %s48
      %s68 = sphi 0, %s68
      %s70 = sphi 0, %s68
      %s71 = sphi 0, %s70
      %s85 = sphi 0, %s71
      %s89 = sphi 0, %s89
      %s91 = sphi 0, %s89
      %s92 = sphi 0, %s91
      %s106 = sphi 0, %s92
      %s110 = sphi 0, %s110
      %s112 = sphi 0, %s110
      %s113 = sphi 0, %s112
      %s127 = sphi 0, %s113
      %s131 = sphi 0, %s131
      %s133 = sphi 0, %s131
      %s134 = sphi 0, %s133
      %s148 = sphi 0, %s134
      %s152 = sphi 0, %s152
      %s154 = sphi 0, %s152
      %s155 = sphi 0, %s154
      %s169 = sphi 0, %s155
      %s173 = sphi 0, %s173
      %s175 = sphi 0, %s173
      %s176 = sphi 0, %s175
      %s190 = sphi 0, %s176
      %s194 = sphi 0, %s194
      %s196 = sphi 0, %s194
      %s197 = sphi 0, %s196
      %s211 = sphi 0, %s197
      %s215 = sphi 0, %s215
      %s217 = sphi 0, %s215
      %s218 = sphi 0, %s217
      %s232 = sphi 0, %s218
      %s236 = sphi 0, %s236
      %s238 = sphi 0, %s236
      %s239 = sphi 0, %s238
      %s253 = sphi 0, %s239
      %s257 = sphi 0, %s257
      %s259 = sphi 0, %s257
      %s260 = sphi 0, %s259
      %s274 = sphi 0, %s260
      %s278 = sphi 0, %s278
      %s280 = sphi 0, %s278
      %s281 = sphi 0, %s280
      %s295 = sphi 0, %s281
      %s299 = sphi 0, %s299
      %s301 = sphi 0, %s299
      %s302 = sphi 0, %s301
      %s316 = sphi 0, %s302
      %s320 = sphi 0, %s320
      %s322 = sphi 0, %s320
      %s323 = sphi 0, %s322
      %s337 = sphi 0, %s323
      %s341 = sphi 0, %s341
      %s343 = sphi 0, %s341
      %s344 = sphi 0, %s343
      %s358 = sphi 0, %s344
      %s364 = sphi 0, %s366
      %s367 = sphi 0, %s364
      %s368 = sphi 0, %s367
      %s384 = sphi 0, %s368
    $region4: #{tpu_custom_call.1} parent=1 // loop_header_branch
      %37 = sbr.rel (%p35) target = $region8
    $region5: #{tpu_custom_call.1} parent=1 // loop_body
      %s39 = ssub.s32 %s34, 1
      %s40 = ssub.s32 %s34, 2
      %s41 = sadd.s32 %s34, 1
      %s42 = ssub.s32 %s34, %s41
      %p43 = scmp.eq.s32.totalorder %s42, 0
      %s45 = sadd.s32 %s44, 1
      %s46 = scalar_select %p43, %s44, %s45
      %p49 = pneg %p43
      %p50 = scmp.eq.s32.totalorder %s34, 1
      %p51 = por %p49, %p50
      %p52 = scmp.ne.s32.totalorder %s44, %s47
      %p53 = scmp.eq.s32.totalorder %s34, 0
      %p54 = por %p52, %p53
      %p55 = scmp.ne.s32.totalorder %s44, %s47
      %p56 = scmp.eq.s32.totalorder %s39, 1
      %p57 = por %p55, %p56
      %p58 = scmp.ne.s32.totalorder %s47, %s48
      %p59 = scmp.eq.s32.totalorder %s39, 0
      %p60 = por %p58, %p59
      %p61 = scmp.ne.s32.totalorder %s47, %s48
      %p62 = scmp.eq.s32.totalorder %s40, 1
      %p63 = por %p61, %p62
      %p65 = scmp.ne.s32.totalorder %s48, %s64
      %p66 = scmp.eq.s32.totalorder %s40, 0
      %p67 = por %p65, %p66
      %s69 = sadd.s32 %s68, 1
      %p72 = scmp.eq.s32.totalorder %s34, 1
      %p73 = scmp.ne.s32.totalorder %s68, %s70
      %p74 = scmp.eq.s32.totalorder %s34, 0
      %p75 = por %p73, %p74
      %p76 = scmp.ne.s32.totalorder %s68, %s70
      %p77 = scmp.eq.s32.totalorder %s39, 1
      %p78 = por %p76, %p77
      %p79 = scmp.ne.s32.totalorder %s70, %s71
      %p80 = scmp.eq.s32.totalorder %s39, 0
      %p81 = por %p79, %p80
      %p82 = scmp.ne.s32.totalorder %s70, %s71
      %p83 = scmp.eq.s32.totalorder %s40, 1
      %p84 = por %p82, %p83
      %p86 = scmp.ne.s32.totalorder %s71, %s85
      %p87 = scmp.eq.s32.totalorder %s40, 0
      %p88 = por %p86, %p87
      %s90 = sadd.s32 %s89, 1
      %p93 = scmp.eq.s32.totalorder %s34, 1
      %p94 = scmp.ne.s32.totalorder %s89, %s91
      %p95 = scmp.eq.s32.totalorder %s34, 0
      %p96 = por %p94, %p95
      %p97 = scmp.ne.s32.totalorder %s89, %s91
      %p98 = scmp.eq.s32.totalorder %s39, 1
      %p99 = por %p97, %p98
      %p100 = scmp.ne.s32.totalorder %s91, %s92
      %p101 = scmp.eq.s32.totalorder %s39, 0
      %p102 = por %p100, %p101
      %p103 = scmp.ne.s32.totalorder %s91, %s92
      %p104 = scmp.eq.s32.totalorder %s40, 1
      %p105 = por %p103, %p104
      %p107 = scmp.ne.s32.totalorder %s92, %s106
      %p108 = scmp.eq.s32.totalorder %s40, 0
      %p109 = por %p107, %p108
      %s111 = sadd.s32 %s110, 1
      %p114 = scmp.eq.s32.totalorder %s34, 1
      %p115 = scmp.ne.s32.totalorder %s110, %s112
      %p116 = scmp.eq.s32.totalorder %s34, 0
      %p117 = por %p115, %p116
      %p118 = scmp.ne.s32.totalorder %s110, %s112
      %p119 = scmp.eq.s32.totalorder %s39, 1
      %p120 = por %p118, %p119
      %p121 = scmp.ne.s32.totalorder %s112, %s113
      %p122 = scmp.eq.s32.totalorder %s39, 0
      %p123 = por %p121, %p122
      %p124 = scmp.ne.s32.totalorder %s112, %s113
      %p125 = scmp.eq.s32.totalorder %s40, 1
      %p126 = por %p124, %p125
      %p128 = scmp.ne.s32.totalorder %s113, %s127
      %p129 = scmp.eq.s32.totalorder %s40, 0
      %p130 = por %p128, %p129
      %s132 = sadd.s32 %s131, 1
      %p135 = scmp.eq.s32.totalorder %s34, 1
      %p136 = scmp.ne.s32.totalorder %s131, %s133
      %p137 = scmp.eq.s32.totalorder %s34, 0
      %p138 = por %p136, %p137
      %p139 = scmp.ne.s32.totalorder %s131, %s133
      %p140 = scmp.eq.s32.totalorder %s39, 1
      %p141 = por %p139, %p140
      %p142 = scmp.ne.s32.totalorder %s133, %s134
      %p143 = scmp.eq.s32.totalorder %s39, 0
      %p144 = por %p142, %p143
      %p145 = scmp.ne.s32.totalorder %s133, %s134
      %p146 = scmp.eq.s32.totalorder %s40, 1
      %p147 = por %p145, %p146
      %p149 = scmp.ne.s32.totalorder %s134, %s148
      %p150 = scmp.eq.s32.totalorder %s40, 0
      %p151 = por %p149, %p150
      %s153 = sadd.s32 %s152, 1
      %p156 = scmp.eq.s32.totalorder %s34, 1
      %p157 = scmp.ne.s32.totalorder %s152, %s154
      %p158 = scmp.eq.s32.totalorder %s34, 0
      %p159 = por %p157, %p158
      %p160 = scmp.ne.s32.totalorder %s152, %s154
      %p161 = scmp.eq.s32.totalorder %s39, 1
      %p162 = por %p160, %p161
      %p163 = scmp.ne.s32.totalorder %s154, %s155
      %p164 = scmp.eq.s32.totalorder %s39, 0
      %p165 = por %p163, %p164
      %p166 = scmp.ne.s32.totalorder %s154, %s155
      %p167 = scmp.eq.s32.totalorder %s40, 1
      %p168 = por %p166, %p167
      %p170 = scmp.ne.s32.totalorder %s155, %s169
      %p171 = scmp.eq.s32.totalorder %s40, 0
      %p172 = por %p170, %p171
      %s174 = sadd.s32 %s173, 1
      %p177 = scmp.eq.s32.totalorder %s34, 1
      %p178 = scmp.ne.s32.totalorder %s173, %s175
      %p179 = scmp.eq.s32.totalorder %s34, 0
      %p180 = por %p178, %p179
      %p181 = scmp.ne.s32.totalorder %s173, %s175
      %p182 = scmp.eq.s32.totalorder %s39, 1
      %p183 = por %p181, %p182
      %p184 = scmp.ne.s32.totalorder %s175, %s176
      %p185 = scmp.eq.s32.totalorder %s39, 0
      %p186 = por %p184, %p185
      %p187 = scmp.ne.s32.totalorder %s175, %s176
      %p188 = scmp.eq.s32.totalorder %s40, 1
      %p189 = por %p187, %p188
      %p191 = scmp.ne.s32.totalorder %s176, %s190
      %p192 = scmp.eq.s32.totalorder %s40, 0
      %p193 = por %p191, %p192
      %s195 = sadd.s32 %s194, 1
      %p198 = scmp.eq.s32.totalorder %s34, 1
      %p199 = scmp.ne.s32.totalorder %s194, %s196
      %p200 = scmp.eq.s32.totalorder %s34, 0
      %p201 = por %p199, %p200
      %p202 = scmp.ne.s32.totalorder %s194, %s196
      %p203 = scmp.eq.s32.totalorder %s39, 1
      %p204 = por %p202, %p203
      %p205 = scmp.ne.s32.totalorder %s196, %s197
      %p206 = scmp.eq.s32.totalorder %s39, 0
      %p207 = por %p205, %p206
      %p208 = scmp.ne.s32.totalorder %s196, %s197
      %p209 = scmp.eq.s32.totalorder %s40, 1
      %p210 = por %p208, %p209
      %p212 = scmp.ne.s32.totalorder %s197, %s211
      %p213 = scmp.eq.s32.totalorder %s40, 0
      %p214 = por %p212, %p213
      %s216 = sadd.s32 %s215, 1
      %p219 = scmp.eq.s32.totalorder %s34, 1
      %p220 = scmp.ne.s32.totalorder %s215, %s217
      %p221 = scmp.eq.s32.totalorder %s34, 0
      %p222 = por %p220, %p221
      %p223 = scmp.ne.s32.totalorder %s215, %s217
      %p224 = scmp.eq.s32.totalorder %s39, 1
      %p225 = por %p223, %p224
      %p226 = scmp.ne.s32.totalorder %s217, %s218
      %p227 = scmp.eq.s32.totalorder %s39, 0
      %p228 = por %p226, %p227
      %p229 = scmp.ne.s32.totalorder %s217, %s218
      %p230 = scmp.eq.s32.totalorder %s40, 1
      %p231 = por %p229, %p230
      %p233 = scmp.ne.s32.totalorder %s218, %s232
      %p234 = scmp.eq.s32.totalorder %s40, 0
      %p235 = por %p233, %p234
      %s237 = sadd.s32 %s236, 1
      %p240 = scmp.eq.s32.totalorder %s34, 1
      %p241 = scmp.ne.s32.totalorder %s236, %s238
      %p242 = scmp.eq.s32.totalorder %s34, 0
      %p243 = por %p241, %p242
      %p244 = scmp.ne.s32.totalorder %s236, %s238
      %p245 = scmp.eq.s32.totalorder %s39, 1
      %p246 = por %p244, %p245
      %p247 = scmp.ne.s32.totalorder %s238, %s239
      %p248 = scmp.eq.s32.totalorder %s39, 0
      %p249 = por %p247, %p248
      %p250 = scmp.ne.s32.totalorder %s238, %s239
      %p251 = scmp.eq.s32.totalorder %s40, 1
      %p252 = por %p250, %p251
      %p254 = scmp.ne.s32.totalorder %s239, %s253
      %p255 = scmp.eq.s32.totalorder %s40, 0
      %p256 = por %p254, %p255
      %s258 = sadd.s32 %s257, 1
      %p261 = scmp.eq.s32.totalorder %s34, 1
      %p262 = scmp.ne.s32.totalorder %s257, %s259
      %p263 = scmp.eq.s32.totalorder %s34, 0
      %p264 = por %p262, %p263
      %p265 = scmp.ne.s32.totalorder %s257, %s259
      %p266 = scmp.eq.s32.totalorder %s39, 1
      %p267 = por %p265, %p266
      %p268 = scmp.ne.s32.totalorder %s259, %s260
      %p269 = scmp.eq.s32.totalorder %s39, 0
      %p270 = por %p268, %p269
      %p271 = scmp.ne.s32.totalorder %s259, %s260
      %p272 = scmp.eq.s32.totalorder %s40, 1
      %p273 = por %p271, %p272
      %p275 = scmp.ne.s32.totalorder %s260, %s274
      %p276 = scmp.eq.s32.totalorder %s40, 0
      %p277 = por %p275, %p276
      %s279 = sadd.s32 %s278, 1
      %p282 = scmp.eq.s32.totalorder %s34, 1
      %p283 = scmp.ne.s32.totalorder %s278, %s280
      %p284 = scmp.eq.s32.totalorder %s34, 0
      %p285 = por %p283, %p284
      %p286 = scmp.ne.s32.totalorder %s278, %s280
      %p287 = scmp.eq.s32.totalorder %s39, 1
      %p288 = por %p286, %p287
      %p289 = scmp.ne.s32.totalorder %s280, %s281
      %p290 = scmp.eq.s32.totalorder %s39, 0
      %p291 = por %p289, %p290
      %p292 = scmp.ne.s32.totalorder %s280, %s281
      %p293 = scmp.eq.s32.totalorder %s40, 1
      %p294 = por %p292, %p293
      %p296 = scmp.ne.s32.totalorder %s281, %s295
      %p297 = scmp.eq.s32.totalorder %s40, 0
      %p298 = por %p296, %p297
      %s300 = sadd.s32 %s299, 1
      %p303 = scmp.eq.s32.totalorder %s34, 1
      %p304 = scmp.ne.s32.totalorder %s299, %s301
      %p305 = scmp.eq.s32.totalorder %s34, 0
      %p306 = por %p304, %p305
      %p307 = scmp.ne.s32.totalorder %s299, %s301
      %p308 = scmp.eq.s32.totalorder %s39, 1
      %p309 = por %p307, %p308
      %p310 = scmp.ne.s32.totalorder %s301, %s302
      %p311 = scmp.eq.s32.totalorder %s39, 0
      %p312 = por %p310, %p311
      %p313 = scmp.ne.s32.totalorder %s301, %s302
      %p314 = scmp.eq.s32.totalorder %s40, 1
      %p315 = por %p313, %p314
      %p317 = scmp.ne.s32.totalorder %s302, %s316
      %p318 = scmp.eq.s32.totalorder %s40, 0
      %p319 = por %p317, %p318
      %s321 = sadd.s32 %s320, 1
      %p324 = scmp.eq.s32.totalorder %s34, 1
      %p325 = scmp.ne.s32.totalorder %s320, %s322
      %p326 = scmp.eq.s32.totalorder %s34, 0
      %p327 = por %p325, %p326
      %p328 = scmp.ne.s32.totalorder %s320, %s322
      %p329 = scmp.eq.s32.totalorder %s39, 1
      %p330 = por %p328, %p329
      %p331 = scmp.ne.s32.totalorder %s322, %s323
      %p332 = scmp.eq.s32.totalorder %s39, 0
      %p333 = por %p331, %p332
      %p334 = scmp.ne.s32.totalorder %s322, %s323
      %p335 = scmp.eq.s32.totalorder %s40, 1
      %p336 = por %p334, %p335
      %p338 = scmp.ne.s32.totalorder %s323, %s337
      %p339 = scmp.eq.s32.totalorder %s40, 0
      %p340 = por %p338, %p339
      %s342 = sadd.s32 %s341, 1
      %p345 = scmp.eq.s32.totalorder %s34, 1
      %p346 = scmp.ne.s32.totalorder %s341, %s343
      %p347 = scmp.eq.s32.totalorder %s34, 0
      %p348 = por %p346, %p347
      %p349 = scmp.ne.s32.totalorder %s341, %s343
      %p350 = scmp.eq.s32.totalorder %s39, 1
      %p351 = por %p349, %p350
      %p352 = scmp.ne.s32.totalorder %s343, %s344
      %p353 = scmp.eq.s32.totalorder %s39, 0
      %p354 = por %p352, %p353
      %p355 = scmp.ne.s32.totalorder %s343, %s344
      %p356 = scmp.eq.s32.totalorder %s40, 1
      %p357 = por %p355, %p356
      %p359 = scmp.ne.s32.totalorder %s344, %s358
      %p360 = scmp.eq.s32.totalorder %s40, 0
      %p361 = por %p359, %p360
      %s362 = ssub.s32 %s34, %s41
      %p363 = scmp.eq.s32.totalorder %s362, 0
      %s365 = sadd.s32 %s364, 1
      %s366 = scalar_select %p363, %s364, %s365
      %p369 = pneg %p363
      %p370 = scmp.eq.s32.totalorder %s34, 1
      %p371 = por %p369, %p370
      %p372 = scmp.ne.s32.totalorder %s364, %s367
      %p373 = scmp.eq.s32.totalorder %s34, 0
      %p374 = por %p372, %p373
      %p375 = scmp.ne.s32.totalorder %s364, %s367
      %p376 = scmp.eq.s32.totalorder %s39, 1
      %p377 = por %p375, %p376
      %p378 = scmp.ne.s32.totalorder %s367, %s368
      %p379 = scmp.eq.s32.totalorder %s39, 0
      %p380 = por %p378, %p379
      %p381 = scmp.ne.s32.totalorder %s367, %s368
      %p382 = scmp.eq.s32.totalorder %s40, 1
      %p383 = por %p381, %p382
      %p385 = scmp.ne.s32.totalorder %s368, %s384
      %p386 = scmp.eq.s32.totalorder %s40, 0
      %p387 = por %p385, %p386
      %p388 = scmp.le.s32.totalorder 1, %s34
      %p389 = scmp.lt.s32.totalorder %s34, 3
      %p390 = pnand %p388, %p389
      %p391 = pneg %p390
      // Predicated region
      $region9: #{tpu_custom_call.1} parent=5 // pred_check
        _
      $region10: #{tpu_custom_call.1} parent=5 // pred_check_branch
        %393 = sbr.rel (%p390) target = $region12
      $region11: #{tpu_custom_call.1} parent=5 // pred_region
        %s394 = ssub.s32 %s34, 1
        // Predicated region
        $region13: #{tpu_custom_call.1} parent=11 // pred_check
          %p395 = pneg %p81
        $region14: #{tpu_custom_call.1} parent=11 // pred_check_branch
          %397 = sbr.rel (%p395) target = $region16
        $region15: #{tpu_custom_call.1} parent=11 // pred_region
          %s399 = ssub.s32 1024, 1024
          %400 = vsyncadd [#allocation7], %s399
          %s401 = sshll.u32 [#allocation6], 4
          %s402 = int_to_ptr.vmem [resolvable:$true] %s401
          %407 = dma.hbm_to_vmem [thread:$0]  %s1, 1024, %s402, [#allocation7], 64, 64, 4
        $region16: #{tpu_custom_call.1} parent=11 // pred_fallthru
          _
        // Predicated region
        $region17: #{tpu_custom_call.1} parent=11 // pred_check
          %p408 = pneg %p102
        $region18: #{tpu_custom_call.1} parent=11 // pred_check_branch
          %410 = sbr.rel (%p408) target = $region20
        $region19: #{tpu_custom_call.1} parent=11 // pred_region
          %s412 = ssub.s32 64, 64
          %413 = vsyncadd [#allocation7], %s412
          %s414 = sshll.u32 [#allocation8], 4
          %s415 = int_to_ptr.vmem [resolvable:$true] %s414
          %420 = dma.hbm_to_vmem [thread:$0]  %s2, 64, %s415, [#allocation7], 16, 16, 1
        $region20: #{tpu_custom_call.1} parent=11 // pred_fallthru
          _
        // Predicated region
        $region21: #{tpu_custom_call.1} parent=11 // pred_check
          %p421 = pneg %p123
        $region22: #{tpu_custom_call.1} parent=11 // pred_check_branch
          %423 = sbr.rel (%p421) target = $region24
        $region23: #{tpu_custom_call.1} parent=11 // pred_region
          %s425 = ssub.s32 128, 128
          %426 = vsyncadd [#allocation10], %s425
          %s428 = sshll.u32 [#allocation9], 4
          %s429 = int_to_ptr.vmem [resolvable:$true] %s428
          %431 = dma.hbm_to_vmem [thread:$0]  %s3, 128, %s429, [#allocation10]
        $region24: #{tpu_custom_call.1} parent=11 // pred_fallthru
          _
        // Predicated region
        $region25: #{tpu_custom_call.1} parent=11 // pred_check
          %p432 = pneg %p144
        $region26: #{tpu_custom_call.1} parent=11 // pred_check_branch
          %434 = sbr.rel (%p432) target = $region28
        $region27: #{tpu_custom_call.1} parent=11 // pred_region
          %s436 = ssub.s32 128, 128
          %437 = vsyncadd [#allocation10], %s436
          %s439 = sshll.u32 [#allocation11], 4
          %s440 = int_to_ptr.vmem [resolvable:$true] %s439
          %442 = dma.hbm_to_vmem [thread:$0]  %s4, 128, %s440, [#allocation10]
        $region28: #{tpu_custom_call.1} parent=11 // pred_fallthru
          _
        // Predicated region
        $region29: #{tpu_custom_call.1} parent=11 // pred_check
          %p443 = pneg %p165
        $region30: #{tpu_custom_call.1} parent=11 // pred_check_branch
          %445 = sbr.rel (%p443) target = $region32
        $region31: #{tpu_custom_call.1} parent=11 // pred_region
          %s447 = ssub.s32 256, 256
          %448 = vsyncadd [#allocation13], %s447
          %s449 = sshll.u32 [#allocation12], 4
          %s450 = int_to_ptr.vmem [resolvable:$true] %s449
          %455 = dma.hbm_to_vmem [thread:$0]  %s5, 256, %s450, [#allocation13], 64, 64, 4
        $region32: #{tpu_custom_call.1} parent=11 // pred_fallthru
          _
        // Predicated region
        $region33: #{tpu_custom_call.1} parent=11 // pred_check
          %p456 = pneg %p186
        $region34: #{tpu_custom_call.1} parent=11 // pred_check_branch
          %458 = sbr.rel (%p456) target = $region36
        $region35: #{tpu_custom_call.1} parent=11 // pred_region
          %s460 = ssub.s32 16, 16
          %461 = vsyncadd [#allocation13], %s460
          %s463 = sshll.u32 [#allocation14], 4
          %s464 = int_to_ptr.vmem [resolvable:$true] %s463
          %466 = dma.hbm_to_vmem [thread:$0]  %s6, 16, %s464, [#allocation13]
        $region36: #{tpu_custom_call.1} parent=11 // pred_fallthru
          _
        // Predicated region
        $region37: #{tpu_custom_call.1} parent=11 // pred_check
          %p467 = pneg %p207
        $region38: #{tpu_custom_call.1} parent=11 // pred_check_branch
          %469 = sbr.rel (%p467) target = $region40
        $region39: #{tpu_custom_call.1} parent=11 // pred_region
          %s471 = ssub.s32 16, 16
          %472 = vsyncadd [#allocation16], %s471
          %s474 = sshll.u32 [#allocation15], 4
          %s475 = int_to_ptr.vmem [resolvable:$true] %s474
          %477 = dma.hbm_to_vmem [thread:$0]  %s7, 16, %s475, [#allocation16]
        $region40: #{tpu_custom_call.1} parent=11 // pred_fallthru
          _
        // Predicated region
        $region41: #{tpu_custom_call.1} parent=11 // pred_check
          %p478 = pneg %p228
        $region42: #{tpu_custom_call.1} parent=11 // pred_check_branch
          %480 = sbr.rel (%p478) target = $region44
        $region43: #{tpu_custom_call.1} parent=11 // pred_region
          %s482 = ssub.s32 16, 16
          %483 = vsyncadd [#allocation16], %s482
          %s485 = sshll.u32 [#allocation17], 4
          %s486 = int_to_ptr.vmem [resolvable:$true] %s485
          %488 = dma.hbm_to_vmem [thread:$0]  %s8, 16, %s486, [#allocation16]
        $region44: #{tpu_custom_call.1} parent=11 // pred_fallthru
          _
        // Predicated region
        $region45: #{tpu_custom_call.1} parent=11 // pred_check
          %p489 = pneg %p249
        $region46: #{tpu_custom_call.1} parent=11 // pred_check_branch
          %491 = sbr.rel (%p489) target = $region48
        $region47: #{tpu_custom_call.1} parent=11 // pred_region
          %s493 = ssub.s32 256, 256
          %494 = vsyncadd [#allocation19], %s493
          %s495 = sshll.u32 [#allocation18], 4
          %s496 = int_to_ptr.vmem [resolvable:$true] %s495
          %501 = dma.hbm_to_vmem [thread:$0]  %s9, 256, %s496, [#allocation19], 64, 64, 4
        $region48: #{tpu_custom_call.1} parent=11 // pred_fallthru
          _
        // Predicated region
        $region49: #{tpu_custom_call.1} parent=11 // pred_check
          %p502 = pneg %p270
        $region50: #{tpu_custom_call.1} parent=11 // pred_check_branch
          %504 = sbr.rel (%p502) target = $region52
        $region51: #{tpu_custom_call.1} parent=11 // pred_region
          %s506 = ssub.s32 16, 16
          %507 = vsyncadd [#allocation19], %s506
          %s509 = sshll.u32 [#allocation20], 4
          %s510 = int_to_ptr.vmem [resolvable:$true] %s509
          %512 = dma.hbm_to_vmem [thread:$0]  %s10, 16, %s510, [#allocation19]
        $region52: #{tpu_custom_call.1} parent=11 // pred_fallthru
          _
        // Predicated region
        $region53: #{tpu_custom_call.1} parent=11 // pred_check
          %p513 = pneg %p291
        $region54: #{tpu_custom_call.1} parent=11 // pred_check_branch
          %515 = sbr.rel (%p513) target = $region56
        $region55: #{tpu_custom_call.1} parent=11 // pred_region
          %s517 = ssub.s32 512, 512
          %518 = vsyncadd [#allocation22], %s517
          %s519 = sshll.u32 [#allocation21], 4
          %s520 = int_to_ptr.vmem [resolvable:$true] %s519
          %525 = dma.hbm_to_vmem [thread:$0]  %s11, 512, %s520, [#allocation22], 64, 64, 4
        $region56: #{tpu_custom_call.1} parent=11 // pred_fallthru
          _
        // Predicated region
        $region57: #{tpu_custom_call.1} parent=11 // pred_check
          %p526 = pneg %p312
        $region58: #{tpu_custom_call.1} parent=11 // pred_check_branch
          %528 = sbr.rel (%p526) target = $region60
        $region59: #{tpu_custom_call.1} parent=11 // pred_region
          %s530 = ssub.s32 16, 16
          %531 = vsyncadd [#allocation22], %s530
          %s533 = sshll.u32 [#allocation23], 4
          %s534 = int_to_ptr.vmem [resolvable:$true] %s533
          %536 = dma.hbm_to_vmem [thread:$0]  %s12, 16, %s534, [#allocation22]
        $region60: #{tpu_custom_call.1} parent=11 // pred_fallthru
          _
        // Predicated region
        $region61: #{tpu_custom_call.1} parent=11 // pred_check
          %p537 = pneg %p333
        $region62: #{tpu_custom_call.1} parent=11 // pred_check_branch
          %539 = sbr.rel (%p537) target = $region64
        $region63: #{tpu_custom_call.1} parent=11 // pred_region
          %s541 = ssub.s32 16, 16
          %542 = vsyncadd [#allocation25], %s541
          %s544 = sshll.u32 [#allocation24], 4
          %s545 = int_to_ptr.vmem [resolvable:$true] %s544
          %547 = dma.hbm_to_vmem [thread:$0]  %s13, 16, %s545, [#allocation25]
        $region64: #{tpu_custom_call.1} parent=11 // pred_fallthru
          _
        // Predicated region
        $region65: #{tpu_custom_call.1} parent=11 // pred_check
          %p548 = pneg %p354
        $region66: #{tpu_custom_call.1} parent=11 // pred_check_branch
          %550 = sbr.rel (%p548) target = $region68
        $region67: #{tpu_custom_call.1} parent=11 // pred_region
          %s552 = ssub.s32 16, 16
          %553 = vsyncadd [#allocation25], %s552
          %s555 = sshll.u32 [#allocation26], 4
          %s556 = int_to_ptr.vmem [resolvable:$true] %s555
          %558 = dma.hbm_to_vmem [thread:$0]  %s14, 16, %s556, [#allocation25]
        $region68: #{tpu_custom_call.1} parent=11 // pred_fallthru
          _
      $region12: #{tpu_custom_call.1} parent=5 // pred_fallthru
        _
      %p559 = scmp.lt.s32.totalorder %s34, 2
      // Predicated region
      $region69: #{tpu_custom_call.1} parent=5 // pred_check
        %p560 = pneg %p559
      $region70: #{tpu_custom_call.1} parent=5 // pred_check_branch
        %562 = sbr.rel (%p560) target = $region72
      $region71: #{tpu_custom_call.1} parent=5 // pred_region
        // Predicated region
        $region73: #{tpu_custom_call.1} parent=71 // pred_check
          %p563 = pneg %p54
        $region74: #{tpu_custom_call.1} parent=71 // pred_check_branch
          %565 = sbr.rel (%p563) target = $region76
        $region75: #{tpu_custom_call.1} parent=71 // pred_region
          %s566 = sand.u32 %s44, 1
          %s567 = scalar_lea.sflag [#allocation4], %s566
          %s568 = sand.u32 %s44, 1
          %s569 = smul.addr %s568, 8
          %s570 = scalar_lea.vmem [#allocation3], %s569
          %s572 = ssub.s32 128, 128
          %573 = vsyncadd %s567, %s572
          %s574 = smul.addr %s34, 128
          %s575 = scalar_lea.hbm %s0, %s574
          %s577 = sshll.u32 %s570, 4
          %s578 = int_to_ptr.vmem [resolvable:$true] %s577
          %580 = dma.hbm_to_vmem [thread:$0]  %s575, 128, %s578, %s567
        $region76: #{tpu_custom_call.1} parent=71 // pred_fallthru
          _
      $region72: #{tpu_custom_call.1} parent=5 // pred_fallthru
        _
      %p581 = scmp.le.s32.totalorder 1, %s34
      %p582 = scmp.lt.s32.totalorder %s34, 3
      %p583 = pnand %p581, %p582
      %p584 = pneg %p583
      // Predicated region
      $region77: #{tpu_custom_call.1} parent=5 // pred_check
        _
      $region78: #{tpu_custom_call.1} parent=5 // pred_check_branch
        %586 = sbr.rel (%p583) target = $region80
      $region79: #{tpu_custom_call.1} parent=5 // pred_region
        %s587 = ssub.s32 %s34, 1
        %s588 = sand.u32 %s47, 1
        %s589 = scalar_lea.sflag [#allocation4], %s588
        %s590 = sand.u32 %s47, 1
        %s591 = smul.addr %s590, 8
        %s592 = scalar_lea.vmem [#allocation3], %s591
        // Predicated region
        $region81: #{tpu_custom_call.1} parent=79 // pred_check
          %p593 = pneg %p60
        $region82: #{tpu_custom_call.1} parent=79 // pred_check_branch
          %595 = sbr.rel (%p593) target = $region84
        $region83: #{tpu_custom_call.1} parent=79 // pred_region
          %596 = dma.done %s589, 128
        $region84: #{tpu_custom_call.1} parent=79 // pred_fallthru
          _
        // Predicated region
        $region85: #{tpu_custom_call.1} parent=79 // pred_check
          %p597 = pneg %p81
        $region86: #{tpu_custom_call.1} parent=79 // pred_check_branch
          %599 = sbr.rel (%p597) target = $region88
        $region87: #{tpu_custom_call.1} parent=79 // pred_region
          %600 = dma.done [#allocation7], 1024
        $region88: #{tpu_custom_call.1} parent=79 // pred_fallthru
          _
        // Predicated region
        $region89: #{tpu_custom_call.1} parent=79 // pred_check
          %p601 = pneg %p102
        $region90: #{tpu_custom_call.1} parent=79 // pred_check_branch
          %603 = sbr.rel (%p601) target = $region92
        $region91: #{tpu_custom_call.1} parent=79 // pred_region
          %604 = dma.done [#allocation7], 64
        $region92: #{tpu_custom_call.1} parent=79 // pred_fallthru
          _
        // Predicated region
        $region93: #{tpu_custom_call.1} parent=79 // pred_check
          %p605 = pneg %p123
        $region94: #{tpu_custom_call.1} parent=79 // pred_check_branch
          %607 = sbr.rel (%p605) target = $region96
        $region95: #{tpu_custom_call.1} parent=79 // pred_region
          %608 = dma.done [#allocation10], 128
        $region96: #{tpu_custom_call.1} parent=79 // pred_fallthru
          _
        // Predicated region
        $region97: #{tpu_custom_call.1} parent=79 // pred_check
          %p609 = pneg %p144
        $region98: #{tpu_custom_call.1} parent=79 // pred_check_branch
          %611 = sbr.rel (%p609) target = $region100
        $region99: #{tpu_custom_call.1} parent=79 // pred_region
          %612 = dma.done [#allocation10], 128
        $region100: #{tpu_custom_call.1} parent=79 // pred_fallthru
          _
        // Predicated region
        $region101: #{tpu_custom_call.1} parent=79 // pred_check
          %p613 = pneg %p165
        $region102: #{tpu_custom_call.1} parent=79 // pred_check_branch
          %615 = sbr.rel (%p613) target = $region104
        $region103: #{tpu_custom_call.1} parent=79 // pred_region
          %616 = dma.done [#allocation13], 256
        $region104: #{tpu_custom_call.1} parent=79 // pred_fallthru
          _
        // Predicated region
        $region105: #{tpu_custom_call.1} parent=79 // pred_check
          %p617 = pneg %p186
        $region106: #{tpu_custom_call.1} parent=79 // pred_check_branch
          %619 = sbr.rel (%p617) target = $region108
        $region107: #{tpu_custom_call.1} parent=79 // pred_region
          %620 = dma.done [#allocation13], 16
        $region108: #{tpu_custom_call.1} parent=79 // pred_fallthru
          _
        // Predicated region
        $region109: #{tpu_custom_call.1} parent=79 // pred_check
          %p621 = pneg %p207
        $region110: #{tpu_custom_call.1} parent=79 // pred_check_branch
          %623 = sbr.rel (%p621) target = $region112
        $region111: #{tpu_custom_call.1} parent=79 // pred_region
          %624 = dma.done [#allocation16], 16
        $region112: #{tpu_custom_call.1} parent=79 // pred_fallthru
          _
        // Predicated region
        $region113: #{tpu_custom_call.1} parent=79 // pred_check
          %p625 = pneg %p228
        $region114: #{tpu_custom_call.1} parent=79 // pred_check_branch
          %627 = sbr.rel (%p625) target = $region116
        $region115: #{tpu_custom_call.1} parent=79 // pred_region
          %628 = dma.done [#allocation16], 16
        $region116: #{tpu_custom_call.1} parent=79 // pred_fallthru
          _
        // Predicated region
        $region117: #{tpu_custom_call.1} parent=79 // pred_check
          %p629 = pneg %p249
        $region118: #{tpu_custom_call.1} parent=79 // pred_check_branch
          %631 = sbr.rel (%p629) target = $region120
        $region119: #{tpu_custom_call.1} parent=79 // pred_region
          %632 = dma.done [#allocation19], 256
        $region120: #{tpu_custom_call.1} parent=79 // pred_fallthru
          _
        // Predicated region
        $region121: #{tpu_custom_call.1} parent=79 // pred_check
          %p633 = pneg %p270
        $region122: #{tpu_custom_call.1} parent=79 // pred_check_branch
          %635 = sbr.rel (%p633) target = $region124
        $region123: #{tpu_custom_call.1} parent=79 // pred_region
          %636 = dma.done [#allocation19], 16
        $region124: #{tpu_custom_call.1} parent=79 // pred_fallthru
          _
        // Predicated region
        $region125: #{tpu_custom_call.1} parent=79 // pred_check
          %p637 = pneg %p291
        $region126: #{tpu_custom_call.1} parent=79 // pred_check_branch
          %639 = sbr.rel (%p637) target = $region128
        $region127: #{tpu_custom_call.1} parent=79 // pred_region
          %640 = dma.done [#allocation22], 512
        $region128: #{tpu_custom_call.1} parent=79 // pred_fallthru
          _
        // Predicated region
        $region129: #{tpu_custom_call.1} parent=79 // pred_check
          %p641 = pneg %p312
        $region130: #{tpu_custom_call.1} parent=79 // pred_check_branch
          %643 = sbr.rel (%p641) target = $region132
        $region131: #{tpu_custom_call.1} parent=79 // pred_region
          %644 = dma.done [#allocation22], 16
        $region132: #{tpu_custom_call.1} parent=79 // pred_fallthru
          _
        // Predicated region
        $region133: #{tpu_custom_call.1} parent=79 // pred_check
          %p645 = pneg %p333
        $region134: #{tpu_custom_call.1} parent=79 // pred_check_branch
          %647 = sbr.rel (%p645) target = $region136
        $region135: #{tpu_custom_call.1} parent=79 // pred_region
          %648 = dma.done [#allocation25], 16
        $region136: #{tpu_custom_call.1} parent=79 // pred_fallthru
          _
        // Predicated region
        $region137: #{tpu_custom_call.1} parent=79 // pred_check
          %p649 = pneg %p354
        $region138: #{tpu_custom_call.1} parent=79 // pred_check_branch
          %651 = sbr.rel (%p649) target = $region140
        $region139: #{tpu_custom_call.1} parent=79 // pred_region
          %652 = dma.done [#allocation25], 16
        $region140: #{tpu_custom_call.1} parent=79 // pred_fallthru
          _
        %s653 = sand.u32 %s47, 1
        %s654 = scalar_lea.sflag [#allocation4], %s653
        %s655 = sand.u32 %s47, 1
        %s656 = smul.addr %s655, 8
        %s657 = scalar_lea.vmem [#allocation3], %s656
        %p658 = pneg %p60
        %p659 = pneg %p57
        %p660 = pneg %p81
        %p661 = pneg %p78
        %p662 = pneg %p102
        %p663 = pneg %p99
        %p664 = pneg %p123
        %p665 = pneg %p120
        %p666 = pneg %p144
        %p667 = pneg %p141
        %p668 = pneg %p165
        %p669 = pneg %p162
        %p670 = pneg %p186
        %p671 = pneg %p183
        %p672 = pneg %p207
        %p673 = pneg %p204
        %p674 = pneg %p228
        %p675 = pneg %p225
        %p676 = pneg %p249
        %p677 = pneg %p246
        %p678 = pneg %p270
        %p679 = pneg %p267
        %p680 = pneg %p291
        %p681 = pneg %p288
        %p682 = pneg %p312
        %p683 = pneg %p309
        %p684 = pneg %p333
        %p685 = pneg %p330
        %p686 = pneg %p354
        %p687 = pneg %p351
        %p688 = pneg %p380
        %p689 = pneg %p377
        %s690 = sand.u32 %s367, 1
        %s691 = scalar_lea.sflag [#allocation5], %s690
        %s692 = sand.u32 %s367, 1
        %s693 = smul.addr %s692, 8
        %s694 = scalar_lea.vmem [#allocation27], %s693
        %v696 = vld [vmem:[%s592] sm:$0xff]
        %v697 = vpack.c.bf16 %v696, %v696
        %v698 = vld [vmem:[#allocation9] sm:$0xff]
        %v699 = vld [vmem:[#allocation11] sm:$0xff]
        %vm700 = vcmask 261120
        %701 = vst.msk [vmem:[#allocation2] sm:$0xff] %vm700, 0.0
        loop: start=0, step=1, limit=4
        $region141: #{tpu_custom_call.1} parent=79 // loop_pre_header
          _
        $region142: #{tpu_custom_call.1} parent=79 // loop_header
          %s703 = sphi 0, %s707
          %p704 = scmp.ge.s32.totalorder %s703, 4
        $region143: #{tpu_custom_call.1} parent=79 // loop_header_branch
          %706 = sbr.rel (%p704) target = $region147
        $region144: #{tpu_custom_call.1} parent=79 // loop_body
          %s708 = smul.u32 %s703, 4
          %s709 = smul.addr %s708, 4
          %s710 = scalar_lea.vmem [#allocation6], %s709
          %v711 = vld [vmem:[%s710] sm:$0xf]
          %v712 = vld [vmem:[%s710 + $0x4] sm:$0xf]
          %v713 = vld [vmem:[%s710 + $0x8] sm:$0xf]
          %v714 = vld [vmem:[%s710 + $0xc] sm:$0xf]
          %s715 = scalar_lea.vmem [#allocation8], %s703
          %v716 = vld [vmem:[%s715] sm:$0x1]
          %v718 = vlaneseq
          %v719 = vshrl.u32 %v718, 7
          %v720 = vsub.s32 0, %v719
          %v721 = vrot.slane %v716, %v720
          %v727 = vunpack.c.l.b16 %v711
          %v728 = vunpack.c.l.b16 %v712
          %v729 = vunpack.c.l.b16 %v713
          %v730 = vunpack.c.l.b16 %v714
          %v731 = vpack.c.b16 %v728, %v727
          %v732 = vpack.c.b16 %v730, %v729
          %v736 = vsel %vm700, %v697, 0
          %738 = vmatprep.subr.bf16.mxu0 0
          %739 = vmatpush1.bf16.msra.mxu0 %v731
          %740 = vmatprep.subr.bf16.mxu0 0
          %741 = vmatpush1.bf16.msra.mxu0 %v732
          %742 = vmatprep.subr.bf16.mxu0 0
          %743 = vmatpush1.bf16.msra.mxu0 0
          %744 = vmatprep.subr.bf16.mxu0 0
          %745 = vmatpush1.bf16.msra.mxu0 0
          %746 = vmatprep.subr.bf16.mxu0 0
          %747 = vmatpush1.bf16.msra.mxu0 0
          %748 = vmatprep.subr.bf16.mxu0 0
          %749 = vmatpush1.bf16.msra.mxu0 0
          %750 = vmatprep.subr.bf16.mxu0 0
          %751 = vmatpush1.bf16.msra.mxu0 0
          %752 = vmatprep.subr.bf16.mxu0 0
          %753 = vmatpush1.bf16.msra.mxu0 0
          %754 = vmatprep.subr.bf16.mxu0 0
          %755 = vmatpush1.bf16.msra.mxu0 0
          %756 = vmatprep.subr.bf16.mxu0 0
          %757 = vmatpush1.bf16.msra.mxu0 0
          %758 = vmatprep.subr.bf16.mxu0 0
          %759 = vmatpush1.bf16.msra.mxu0 0
          %760 = vmatprep.subr.bf16.mxu0 0
          %761 = vmatpush1.bf16.msra.mxu0 0
          %762 = vmatprep.subr.bf16.mxu0 0
          %763 = vmatpush1.bf16.msra.mxu0 0
          %764 = vmatprep.subr.bf16.mxu0 0
          %765 = vmatpush1.bf16.msra.mxu0 0
          %766 = vmatprep.subr.bf16.mxu0 0
          %767 = vmatpush1.bf16.msra.mxu0 0
          %768 = vmatprep.subr.bf16.mxu0 0
          %769 = vmatpush1.bf16.msra.mxu0 0
          %770 = vmatprep.mubr.bf16.mxu0 0
          %771 = vmatmul.mubr.bf16.gmra.mrb[0].mxu0 %v736
          %v772 = vpop.f32.mrb[0].mxu0
          %v773 = vadd.f32 %v721, %v772
          %v774 = vpop.f32.mrb[0].mxu0
          %v775 = vpop.f32.mrb[0].mxu0
          %v776 = vpop.f32.mrb[0].mxu0
          %777 = vdwg.mxu0
          %v778 = vmul.f32 %v773, %v698
          %780 = vrot.lane.b32.xlu0 %v773, 124
          %v781 = vpop.permute.xlu0 %780
          %783 = vrot.lane.b32.xlu0 %v773, 4
          %v784 = vpop.permute.xlu0 %783
          %vm786 = vcmask 31744
          %v787 = vsel %vm786, %v781, %v784
          %v788 = vmul.f32 %v787, %v699
          %v789 = vadd.f32 %v778, %v788
          %791 = vrot.lane.b32.xlu0 %v698, 8
          %v792 = vpop.permute.xlu0 %791
          %v794 = vmul.f32 %v773, %v792
          %795 = vrot.lane.b32.xlu0 %v773, 116
          %v796 = vpop.permute.xlu0 %795
          %v798 = vsel %vm786, %v796, %v781
          %v799 = vmul.f32 %v798, %v699
          %801 = vrot.lane.b32.xlu0 %v799, 8
          %v802 = vpop.permute.xlu0 %801
          %v804 = vadd.f32 %v794, %v802
          %v805 = vpack.c.bf16 %v789, %v789
          %v806 = vpack.c.bf16 %v804, %v804
          %808 = vrot.lane.b32.xlu0 %v806, 120
          %v809 = vpop.permute.xlu0 %808
          %vm810 = vcmask 64512
          %v812 = vsel %vm810, %v805, 0
          %v815 = vsel %vm810, %v809, 0
          %817 = vmatprep.subr.bf16.mxu0 0
          %818 = vmatpush1.bf16.xpose.msra.mxu0 %v815
          %819 = vmatprep.subr.bf16.mxu0 0
          %820 = vmatpush1.bf16.xpose.msra.mxu0 0
          %821 = vmatprep.subr.bf16.mxu0 0
          %822 = vmatpush1.bf16.xpose.msra.mxu0 0
          %823 = vmatprep.subr.bf16.mxu0 0
          %824 = vmatpush1.bf16.xpose.msra.mxu0 0
          %825 = vmatprep.subr.bf16.mxu0 0
          %826 = vmatpush1.bf16.xpose.msra.mxu0 0
          %827 = vmatprep.subr.bf16.mxu0 0
          %828 = vmatpush1.bf16.xpose.msra.mxu0 0
          %829 = vmatprep.subr.bf16.mxu0 0
          %830 = vmatpush1.bf16.xpose.msra.mxu0 0
          %831 = vmatprep.subr.bf16.mxu0 0
          %832 = vmatpush1.bf16.xpose.msra.mxu0 0
          %833 = vmatprep.subr.bf16.mxu0 0
          %834 = vmatpush1.bf16.xpose.msra.mxu0 0
          %835 = vmatprep.subr.bf16.mxu0 0
          %836 = vmatpush1.bf16.xpose.msra.mxu0 0
          %837 = vmatprep.subr.bf16.mxu0 0
          %838 = vmatpush1.bf16.xpose.msra.mxu0 0
          %839 = vmatprep.subr.bf16.mxu0 0
          %840 = vmatpush1.bf16.xpose.msra.mxu0 0
          %841 = vmatprep.subr.bf16.mxu0 0
          %842 = vmatpush1.bf16.xpose.msra.mxu0 0
          %843 = vmatprep.subr.bf16.mxu0 0
          %844 = vmatpush1.bf16.xpose.msra.mxu0 0
          %845 = vmatprep.subr.bf16.mxu0 0
          %846 = vmatpush1.bf16.xpose.msra.mxu0 0
          %847 = vmatprep.subr.bf16.mxu0 0
          %848 = vmatpush1.bf16.xpose.msra.mxu0 0
          %849 = vmatprep.mubr.bf16.mxu0 0
          %850 = vmatmul.mubr.bf16.gmra.mrb[0].mxu0 %v812
          %v851 = vpop.f32.mrb[0].mxu0
          %v852 = vadd.f32 0.0, %v851
          %v853 = vpop.f32.mrb[0].mxu0
          %v854 = vpop.f32.mrb[0].mxu0
          %v855 = vpop.f32.mrb[0].mxu0
          %856 = vdwg.mxu0
          %v857 = vsel %vm810, %v852, -inf
          %858 = vmax.xlane.f32.xlu0 %v857
          %v859 = vpop.xlane.xlu0 %858
          %v860 = vsub.f32 %v852, %v859
          %v861 = vmul.f32 %v860, 1.442695
          %v862 = vpow.pop %v861
          %v863 = vsel %vm810, %v862, 0.0
          %864 = vadd.xlane.f32.xlu0 %v863
          %v865 = vpop.xlane.xlu0 %864
          %v866 = vrcp.pop %v865
          %v867 = vmul.f32 %v862, %v866
          %v868 = vpack.c.bf16 %v867, %v867
          %v869 = vpack.c.bf16 %v773, %v773
          %871 = vrot.lane.b32.xlu0 %v869, 112
          %v872 = vpop.permute.xlu0 %871
          %v874 = vsel %vm810, %v868, 0
          %vm876 = vcmask 1043456
          %v878 = vsel %vm876, %v872, 0
          %880 = vmatprep.subr.bf16.mxu0 0
          %881 = vmatpush1.bf16.msra.mxu0 %v878
          %882 = vmatprep.subr.bf16.mxu0 0
          %883 = vmatpush1.bf16.msra.mxu0 0
          %884 = vmatprep.subr.bf16.mxu0 0
          %885 = vmatpush1.bf16.msra.mxu0 0
          %886 = vmatprep.subr.bf16.mxu0 0
          %887 = vmatpush1.bf16.msra.mxu0 0
          %888 = vmatprep.subr.bf16.mxu0 0
          %889 = vmatpush1.bf16.msra.mxu0 0
          %890 = vmatprep.subr.bf16.mxu0 0
          %891 = vmatpush1.bf16.msra.mxu0 0
          %892 = vmatprep.subr.bf16.mxu0 0
          %893 = vmatpush1.bf16.msra.mxu0 0
          %894 = vmatprep.subr.bf16.mxu0 0
          %895 = vmatpush1.bf16.msra.mxu0 0
          %896 = vmatprep.subr.bf16.mxu0 0
          %897 = vmatpush1.bf16.msra.mxu0 0
          %898 = vmatprep.subr.bf16.mxu0 0
          %899 = vmatpush1.bf16.msra.mxu0 0
          %900 = vmatprep.subr.bf16.mxu0 0
          %901 = vmatpush1.bf16.msra.mxu0 0
          %902 = vmatprep.subr.bf16.mxu0 0
          %903 = vmatpush1.bf16.msra.mxu0 0
          %904 = vmatprep.subr.bf16.mxu0 0
          %905 = vmatpush1.bf16.msra.mxu0 0
          %906 = vmatprep.subr.bf16.mxu0 0
          %907 = vmatpush1.bf16.msra.mxu0 0
          %908 = vmatprep.subr.bf16.mxu0 0
          %909 = vmatpush1.bf16.msra.mxu0 0
          %910 = vmatprep.subr.bf16.mxu0 0
          %911 = vmatpush1.bf16.msra.mxu0 0
          %912 = vmatprep.mubr.bf16.mxu0 0
          %913 = vmatmul.mubr.bf16.gmra.mrb[0].mxu0 %v874
          %v914 = vpop.f32.mrb[0].mxu0
          %v915 = vadd.f32 0.0, %v914
          %v916 = vpop.f32.mrb[0].mxu0
          %v917 = vpop.f32.mrb[0].mxu0
          %v918 = vpop.f32.mrb[0].mxu0
          %919 = vdwg.mxu0
          %v920 = vld [vmem:[#allocation2] sm:$0xff]
          %v921 = vpack.c.bf16 %v915, %v915
          %s922 = smul.addr %s703, 4
          %s923 = scalar_lea.vmem [#allocation12], %s922
          %v924 = vld [vmem:[%s923] sm:$0xf]
          %v926 = vsel %vm810, %v921, 0
          %v929 = vsel %vm876, %v924, 0
          %931 = vmatprep.subr.bf16.mxu0 0
          %932 = vmatpush1.bf16.msra.mxu0 %v929
          %933 = vmatprep.subr.bf16.mxu0 0
          %934 = vmatpush1.bf16.msra.mxu0 0
          %935 = vmatprep.subr.bf16.mxu0 0
          %936 = vmatpush1.bf16.msra.mxu0 0
          %937 = vmatprep.subr.bf16.mxu0 0
          %938 = vmatpush1.bf16.msra.mxu0 0
          %939 = vmatprep.subr.bf16.mxu0 0
          %940 = vmatpush1.bf16.msra.mxu0 0
          %941 = vmatprep.subr.bf16.mxu0 0
          %942 = vmatpush1.bf16.msra.mxu0 0
          %943 = vmatprep.subr.bf16.mxu0 0
          %944 = vmatpush1.bf16.msra.mxu0 0
          %945 = vmatprep.subr.bf16.mxu0 0
          %946 = vmatpush1.bf16.msra.mxu0 0
          %947 = vmatprep.subr.bf16.mxu0 0
          %948 = vmatpush1.bf16.msra.mxu0 0
          %949 = vmatprep.subr.bf16.mxu0 0
          %950 = vmatpush1.bf16.msra.mxu0 0
          %951 = vmatprep.subr.bf16.mxu0 0
          %952 = vmatpush1.bf16.msra.mxu0 0
          %953 = vmatprep.subr.bf16.mxu0 0
          %954 = vmatpush1.bf16.msra.mxu0 0
          %955 = vmatprep.subr.bf16.mxu0 0
          %956 = vmatpush1.bf16.msra.mxu0 0
          %957 = vmatprep.subr.bf16.mxu0 0
          %958 = vmatpush1.bf16.msra.mxu0 0
          %959 = vmatprep.subr.bf16.mxu0 0
          %960 = vmatpush1.bf16.msra.mxu0 0
          %961 = vmatprep.subr.bf16.mxu0 0
          %962 = vmatpush1.bf16.msra.mxu0 0
          %963 = vmatprep.mubr.bf16.mxu0 0
          %964 = vmatmul.mubr.bf16.gmra.mrb[0].mxu0 %v926
          %v965 = vpop.f32.mrb[0].mxu0
          %v966 = vadd.f32 0.0, %v965
          %v967 = vpop.f32.mrb[0].mxu0
          %v968 = vpop.f32.mrb[0].mxu0
          %v969 = vpop.f32.mrb[0].mxu0
          %970 = vdwg.mxu0
          %v971 = vadd.f32 %v920, %v966
          %972 = vst.msk [vmem:[#allocation2] sm:$0xff] %vm700, %v971
        $region145: #{tpu_custom_call.1} parent=79 // loop_footer
          %s707 = sadd.s32 1, %s703
        $region146: #{tpu_custom_call.1} parent=79 // loop_footer_branch
          %702 = sbr.rel target = $region142
        $region147: #{tpu_custom_call.1} parent=79 // loop_exit
          _
        %v973 = vld [vmem:[#allocation2] sm:$0xff]
        %v974 = vld [vmem:[#allocation14] sm:$0x1]
        %v976 = vlaneseq
        %v977 = vshrl.u32 %v976, 7
        %v978 = vsub.s32 0, %v977
        %v979 = vrot.slane %v974, %v978
        %v981 = vadd.f32 %v973, %v979
        %v982 = vadd.f32 %v696, %v981
        %v983 = vsel %vm700, %v982, 0.0
        %984 = vadd.xlane.f32.xlu0 %v983
        %v985 = vpop.xlane.xlu0 %984
        %v986 = vrcp.pop 32.0
        %v987 = vmul.f32 %v985, %v986
        %v988 = vsub.f32 %v982, %v987
        %v989 = vmul.f32 %v988, %v988
        %v990 = vsel %vm700, %v989, 0.0
        %991 = vadd.xlane.f32.xlu0 %v990
        %v992 = vpop.xlane.xlu0 %991
        %v993 = vmul.f32 %v992, %v986
        %v994 = vadd.f32 %v993, 1e-05
        %v995 = vrsqrt.pop %v994
        %v996 = vmul.f32 %v988, %v995
        %v997 = vld [vmem:[#allocation15] sm:$0x1]
        %v999 = vlaneseq
        %v1000 = vshrl.u32 %v999, 7
        %v1001 = vsub.s32 0, %v1000
        %v1002 = vrot.slane %v997, %v1001
        %v1004 = vmul.f32 %v996, %v1002
        %v1005 = vld [vmem:[#allocation17] sm:$0x1]
        %v1007 = vlaneseq
        %v1008 = vshrl.u32 %v1007, 7
        %v1009 = vsub.s32 0, %v1008
        %v1010 = vrot.slane %v1005, %v1009
        %v1012 = vadd.f32 %v1004, %v1010
        %v1013 = vpack.c.bf16 %v1012, %v1012
        %v1014 = vld [vmem:[#allocation18] sm:$0xf]
        %v1015 = vld [vmem:[#allocation18 + $0x4] sm:$0xf]
        %v1016 = vld [vmem:[#allocation18 + $0x8] sm:$0xf]
        %v1017 = vld [vmem:[#allocation18 + $0xc] sm:$0xf]
        %v1018 = vld [vmem:[#allocation20] sm:$0x1]
        %v1020 = vlaneseq
        %v1021 = vshrl.u32 %v1020, 7
        %v1022 = vsub.s32 0, %v1021
        %v1023 = vrot.slane %v1018, %v1022
        %v1029 = vunpack.c.l.b16 %v1014
        %v1030 = vunpack.c.l.b16 %v1015
        %v1031 = vunpack.c.l.b16 %v1016
        %v1032 = vunpack.c.l.b16 %v1017
        %v1033 = vpack.c.b16 %v1030, %v1029
        %v1034 = vpack.c.b16 %v1032, %v1031
        %v1038 = vsel %vm700, %v1013, 0
        %1040 = vmatprep.subr.bf16.mxu0 0
        %1041 = vmatpush1.bf16.msra.mxu0 %v1033
        %1042 = vmatprep.subr.bf16.mxu0 0
        %1043 = vmatpush1.bf16.msra.mxu0 %v1034
        %1044 = vmatprep.subr.bf16.mxu0 0
        %1045 = vmatpush1.bf16.msra.mxu0 0
        %1046 = vmatprep.subr.bf16.mxu0 0
        %1047 = vmatpush1.bf16.msra.mxu0 0
        %1048 = vmatprep.subr.bf16.mxu0 0
        %1049 = vmatpush1.bf16.msra.mxu0 0
        %1050 = vmatprep.subr.bf16.mxu0 0
        %1051 = vmatpush1.bf16.msra.mxu0 0
        %1052 = vmatprep.subr.bf16.mxu0 0
        %1053 = vmatpush1.bf16.msra.mxu0 0
        %1054 = vmatprep.subr.bf16.mxu0 0
        %1055 = vmatpush1.bf16.msra.mxu0 0
        %1056 = vmatprep.subr.bf16.mxu0 0
        %1057 = vmatpush1.bf16.msra.mxu0 0
        %1058 = vmatprep.subr.bf16.mxu0 0
        %1059 = vmatpush1.bf16.msra.mxu0 0
        %1060 = vmatprep.subr.bf16.mxu0 0
        %1061 = vmatpush1.bf16.msra.mxu0 0
        %1062 = vmatprep.subr.bf16.mxu0 0
        %1063 = vmatpush1.bf16.msra.mxu0 0
        %1064 = vmatprep.subr.bf16.mxu0 0
        %1065 = vmatpush1.bf16.msra.mxu0 0
        %1066 = vmatprep.subr.bf16.mxu0 0
        %1067 = vmatpush1.bf16.msra.mxu0 0
        %1068 = vmatprep.subr.bf16.mxu0 0
        %1069 = vmatpush1.bf16.msra.mxu0 0
        %1070 = vmatprep.subr.bf16.mxu0 0
        %1071 = vmatpush1.bf16.msra.mxu0 0
        %1072 = vmatprep.mubr.bf16.mxu0 0
        %1073 = vmatmul.mubr.bf16.gmra.mrb[0].mxu0 %v1038
        %v1074 = vpop.f32.mrb[0].mxu0
        %v1075 = vadd.f32 %v1023, %v1074
        %v1076 = vpop.f32.mrb[0].mxu0
        %v1077 = vpop.f32.mrb[0].mxu0
        %v1078 = vpop.f32.mrb[0].mxu0
        %1079 = vdwg.mxu0
        %v1080 = vmax.f32 %v1075, 0.0
        %v1081 = vpack.c.bf16 %v1080, %v1080
        %v1082 = vld [vmem:[#allocation21] sm:$0xf]
        %v1083 = vld [vmem:[#allocation21 + $0x4] sm:$0xf]
        %v1084 = vld [vmem:[#allocation21 + $0x8] sm:$0xf]
        %v1085 = vld [vmem:[#allocation21 + $0xc] sm:$0xf]
        %v1086 = vld [vmem:[#allocation21 + $0x10] sm:$0xf]
        %v1087 = vld [vmem:[#allocation21 + $0x14] sm:$0xf]
        %v1088 = vld [vmem:[#allocation21 + $0x18] sm:$0xf]
        %v1089 = vld [vmem:[#allocation21 + $0x1c] sm:$0xf]
        %v1090 = vld [vmem:[#allocation23] sm:$0x1]
        %v1092 = vlaneseq
        %v1093 = vshrl.u32 %v1092, 7
        %v1094 = vsub.s32 0, %v1093
        %v1095 = vrot.slane %v1090, %v1094
        %v1105 = vunpack.c.l.b16 %v1082
        %v1106 = vunpack.c.l.b16 %v1083
        %v1107 = vunpack.c.l.b16 %v1084
        %v1108 = vunpack.c.l.b16 %v1085
        %v1109 = vunpack.c.l.b16 %v1086
        %v1110 = vunpack.c.l.b16 %v1087
        %v1111 = vunpack.c.l.b16 %v1088
        %v1112 = vunpack.c.l.b16 %v1089
        %v1113 = vpack.c.b16 %v1106, %v1105
        %v1114 = vpack.c.b16 %v1108, %v1107
        %v1115 = vpack.c.b16 %v1110, %v1109
        %v1116 = vpack.c.b16 %v1112, %v1111
        %vm1121 = vcmask 523264
        %v1123 = vsel %vm1121, %v1081, 0
        %1125 = vmatprep.subr.bf16.mxu0 0
        %1126 = vmatpush1.bf16.msra.mxu0 %v1113
        %1127 = vmatprep.subr.bf16.mxu0 0
        %1128 = vmatpush1.bf16.msra.mxu0 %v1114
        %1129 = vmatprep.subr.bf16.mxu0 0
        %1130 = vmatpush1.bf16.msra.mxu0 %v1115
        %1131 = vmatprep.subr.bf16.mxu0 0
        %1132 = vmatpush1.bf16.msra.mxu0 %v1116
        %1133 = vmatprep.subr.bf16.mxu0 0
        %1134 = vmatpush1.bf16.msra.mxu0 0
        %1135 = vmatprep.subr.bf16.mxu0 0
        %1136 = vmatpush1.bf16.msra.mxu0 0
        %1137 = vmatprep.subr.bf16.mxu0 0
        %1138 = vmatpush1.bf16.msra.mxu0 0
        %1139 = vmatprep.subr.bf16.mxu0 0
        %1140 = vmatpush1.bf16.msra.mxu0 0
        %1141 = vmatprep.subr.bf16.mxu0 0
        %1142 = vmatpush1.bf16.msra.mxu0 0
        %1143 = vmatprep.subr.bf16.mxu0 0
        %1144 = vmatpush1.bf16.msra.mxu0 0
        %1145 = vmatprep.subr.bf16.mxu0 0
        %1146 = vmatpush1.bf16.msra.mxu0 0
        %1147 = vmatprep.subr.bf16.mxu0 0
        %1148 = vmatpush1.bf16.msra.mxu0 0
        %1149 = vmatprep.subr.bf16.mxu0 0
        %1150 = vmatpush1.bf16.msra.mxu0 0
        %1151 = vmatprep.subr.bf16.mxu0 0
        %1152 = vmatpush1.bf16.msra.mxu0 0
        %1153 = vmatprep.subr.bf16.mxu0 0
        %1154 = vmatpush1.bf16.msra.mxu0 0
        %1155 = vmatprep.subr.bf16.mxu0 0
        %1156 = vmatpush1.bf16.msra.mxu0 0
        %1157 = vmatprep.mubr.bf16.mxu0 0
        %1158 = vmatmul.mubr.bf16.gmra.mrb[0].mxu0 %v1123
        %v1159 = vpop.f32.mrb[0].mxu0
        %v1160 = vadd.f32 %v1095, %v1159
        %v1161 = vpop.f32.mrb[0].mxu0
        %v1162 = vpop.f32.mrb[0].mxu0
        %v1163 = vpop.f32.mrb[0].mxu0
        %1164 = vdwg.mxu0
        %v1165 = vadd.f32 %v1012, %v1160
        %v1166 = vsel %vm700, %v1165, 0.0
        %1167 = vadd.xlane.f32.xlu0 %v1166
        %v1168 = vpop.xlane.xlu0 %1167
        %v1169 = vmul.f32 %v1168, %v986
        %v1170 = vsub.f32 %v1165, %v1169
        %v1171 = vmul.f32 %v1170, %v1170
        %v1172 = vsel %vm700, %v1171, 0.0
        %1173 = vadd.xlane.f32.xlu0 %v1172
        %v1174 = vpop.xlane.xlu0 %1173
        %v1175 = vmul.f32 %v1174, %v986
        %v1176 = vadd.f32 %v1175, 1e-05
        %v1177 = vrsqrt.pop %v1176
        %v1178 = vmul.f32 %v1170, %v1177
        %v1179 = vld [vmem:[#allocation24] sm:$0x1]
        %v1181 = vlaneseq
        %v1182 = vshrl.u32 %v1181, 7
        %v1183 = vsub.s32 0, %v1182
        %v1184 = vrot.slane %v1179, %v1183
        %v1186 = vmul.f32 %v1178, %v1184
        %v1187 = vld [vmem:[#allocation26] sm:$0x1]
        %v1189 = vlaneseq
        %v1190 = vshrl.u32 %v1189, 7
        %v1191 = vsub.s32 0, %v1190
        %v1192 = vrot.slane %v1187, %v1191
        %v1194 = vadd.f32 %v1186, %v1192
        %1195 = vst.msk [vmem:[%s694] sm:$0xff] %vm700, %v1194
        %s1196 = sand.u32 %s367, 1
        %s1197 = scalar_lea.sflag [#allocation5], %s1196
        %s1198 = sand.u32 %s367, 1
        %s1199 = smul.addr %s1198, 8
        %s1200 = scalar_lea.vmem [#allocation27], %s1199
        // Predicated region
        $region148: #{tpu_custom_call.1} parent=79 // pred_check
          %p1201 = pneg %p377
        $region149: #{tpu_custom_call.1} parent=79 // pred_check_branch
          %1203 = sbr.rel (%p1201) target = $region151
        $region150: #{tpu_custom_call.1} parent=79 // pred_region
          %s1205 = ssub.s32 128, 128
          %1206 = vsyncadd %s1197, %s1205
          %s1207 = smul.addr %s39, 128
          %s1208 = scalar_lea.hbm %s15, %s1207
          %s1210 = sshll.u32 %s1200, 4
          %s1211 = int_to_ptr.vmem [resolvable:$true] %s1210
          %1213 = dma.vmem_to_hbm [thread:$0]  %s1211, 128, %s1208, %s1197
        $region151: #{tpu_custom_call.1} parent=79 // pred_fallthru
          _
      $region80: #{tpu_custom_call.1} parent=5 // pred_fallthru
        _
      %p1214 = scmp.le.s32.totalorder 2, %s34
      // Predicated region
      $region152: #{tpu_custom_call.1} parent=5 // pred_check
        %p1215 = pneg %p1214
      $region153: #{tpu_custom_call.1} parent=5 // pred_check_branch
        %1217 = sbr.rel (%p1215) target = $region155
      $region154: #{tpu_custom_call.1} parent=5 // pred_region
        %s1218 = ssub.s32 %s34, 2
        // Predicated region
        $region156: #{tpu_custom_call.1} parent=154 // pred_check
          %p1219 = pneg %p383
        $region157: #{tpu_custom_call.1} parent=154 // pred_check_branch
          %1221 = sbr.rel (%p1219) target = $region159
        $region158: #{tpu_custom_call.1} parent=154 // pred_region
          %s1222 = sand.u32 %s368, 1
          %s1223 = scalar_lea.sflag [#allocation5], %s1222
          %s1224 = sand.u32 %s368, 1
          %s1225 = smul.addr %s1224, 8
          %s1226 = scalar_lea.vmem [#allocation27], %s1225
          %1227 = dma.done %s1223, 128
        $region159: #{tpu_custom_call.1} parent=154 // pred_fallthru
          _
      $region155: #{tpu_custom_call.1} parent=5 // pred_fallthru
        _
    $region6: #{tpu_custom_call.1} parent=1 // loop_footer
      %s38 = sadd.s32 1, %s34
    $region7: #{tpu_custom_call.1} parent=1 // loop_footer_branch
      %33 = sbr.rel target = $region3
    $region8: #{tpu_custom_call.1} parent=1 // loop_exit
      _
    %1228 = vsyncpa [#allocation4], 1
    %s1229 = scalar_lea.sflag [#allocation4], 1
    %1230 = vsyncpa %s1229, 1
    %1231 = vsyncpa [#allocation7], 1
    %1232 = vsyncpa [#allocation10], 1
    %1233 = vsyncpa [#allocation13], 1
    %1234 = vsyncpa [#allocation16], 1
    %1235 = vsyncpa [#allocation19], 1
    %1236 = vsyncpa [#allocation22], 1
    %1237 = vsyncpa [#allocation25], 1
    %1238 = vsyncpa [#allocation5], 1
    %s1239 = scalar_lea.sflag [#allocation5], 1
    %1240 = vsyncpa %s1239, 1

</llo_original>
